<compile_context>
chip_gen: v6e
topology: v6e:2x2x1
jax: 0.10.0
libtpu: 0.0.40
codegen_flags: <defaults>
</compile_context>

<pallas_src>
import functools

import jax
import jax.numpy as jnp
from jax.experimental import pallas as pl
from jax.experimental.pallas import tpu as pltpu

NEG_SLOPE = 0.01  # torch.nn.LeakyReLU default negative_slope


# ----------------------------- in-kernel helpers -----------------------------

def _lrelu(y):
    return jnp.maximum(y, NEG_SLOPE * y)


def _conv3x3_cm(act, w9, b, tapmask, W):
    """3x3 conv (stride 1, zero pad 1), channel-major, batch folded onto lanes.

    act: (Cin, B*H*W); w9: (Cout, 9*Cin) with tap order (dy, dx, cin);
    b: (Cout, 1); tapmask: (9, B*H*W), zero wherever tap (dy, dx) would read
    outside its own image (also covers the circular wrap of the roll and the
    per-image seams of the folded batch).
    """
    n = act.shape[1]
    taps = []
    t = 0
    for dy in (-1, 0, 1):
        for dx in (-1, 0, 1):
            s = dy * W + dx
            if s == 0:
                taps.append(act)  # centre tap is always valid, no mask needed
            else:
                # rolled[:, i] = act[:, (i + s) % n]; invalid positions masked.
                rolled = pltpu.roll(act, (-s) % n, axis=1)
                taps.append(rolled * tapmask[t:t + 1, :])
            t += 1
    col = jnp.concatenate(taps, axis=0)                      # (9*Cin, N), VMEM only
    y = jnp.dot(w9, col, preferred_element_type=jnp.float32) + b
    return _lrelu(y)


# ----------------------------- fused kernel -----------------------------

def _fcdh_kernel(fh_ref, fl_ref, ed_ref, cs_ref, ps_ref, o_ref, *,
                 B, H, W, coff, lay, kmax):
    f32 = jnp.float32
    HW = H * W

    def wb(i):
        """(weight, bias) for packed layer i (static slab slices, no copies)."""
        r0, co, k = lay[i]
        return ps_ref[r0:r0 + co, 0:k], ps_ref[r0:r0 + co, kmax:kmax + 1]

    up_r0, up_n, nn_r0, nn_n, mk_r0, bc_r0 = coff
    up_bd = cs_ref[up_r0:up_r0 + up_n, :]        # (B*HhWh, N) block-diag bilinear
    nn_bd = cs_ref[nn_r0:nn_r0 + nn_n, :]        # (B*HeWe, N) block-diag nearest
    tapmask = cs_ref[mk_r0:mk_r0 + 9, :]         # (9, N) 3x3 tap validity masks
    bcast = cs_ref[bc_r0:bc_r0 + B, :]           # (B, N) per-image 0/1 indicator

    # ---- self.up2 + self.conv: 1x1 conv applied BEFORE the bilinear upsample.
    # (Wc @ fh) @ U == Wc @ (fh @ U); with out_ch < in_ch this halves the M dim
    # of the large upsample matmul and its intermediate footprint.
    wc, bc = wb(0)
    y0 = jnp.dot(wc, fh_ref[...], preferred_element_type=f32)          # (C, B*HhWh)
    x = _lrelu(jnp.dot(y0, up_bd, preferred_element_type=f32) + bc)    # (C, N)

    r = fl_ref[...]                                                    # (C, N)

    # ---- gate: local attention (w1l split into x/r halves -> no (2C,N) concat)
    w1lx, b1l = wb(1)
    w1lr, _ = wb(2)
    w2l, b2l = wb(3)
    h = _lrelu(jnp.dot(w1lx, x, preferred_element_type=f32)
               + jnp.dot(w1lr, r, preferred_element_type=f32) + b1l)
    xl = _lrelu(jnp.dot(w2l, h, preferred_element_type=f32) + b2l)     # (C, N)

    # ---- gate: global attention at rank B (per-image spatial means; aligned
    # 128-lane slices + XLU reduce), then broadcast back with one tiny matmul.
    w1gx, b1g = wb(4)
    w1gr, _ = wb(5)
    w2g, b2g = wb(6)
    m_x = jnp.concatenate(
        [jnp.mean(x[:, b * HW:(b + 1) * HW], axis=1, keepdims=True) for b in range(B)],
        axis=1)                                                         # (C, B)
    m_r = jnp.concatenate(
        [jnp.mean(r[:, b * HW:(b + 1) * HW], axis=1, keepdims=True) for b in range(B)],
        axis=1)                                                         # (C, B)
    hg = _lrelu(jnp.dot(w1gx, m_x, preferred_element_type=f32)
                + jnp.dot(w1gr, m_r, preferred_element_type=f32) + b1g)  # (inter, B)
    xg = _lrelu(jnp.dot(w2g, hg, preferred_element_type=f32) + b2g)      # (C, B)
    xg_full = jnp.dot(xg, bcast, preferred_element_type=f32)             # (C, N)

    g = jax.nn.sigmoid(xl + xg_full)
    fe = x * g + r * (1.0 - g)                                           # (C, N)

    # ---- self.out: 3x3 conv + folded BN + LReLU
    wo, bo = wb(8)
    out1 = _conv3x3_cm(fe, wo, bo, tapmask, W)

    # ---- edge -> nearest resize -> self.mlp_shared (resize first: Cp < C)
    wm, bm = wb(7)
    ed_up = jnp.dot(ed_ref[...], nn_bd, preferred_element_type=f32)      # (Cp, N)
    actv = _lrelu(jnp.dot(wm, ed_up, preferred_element_type=f32) + bm)   # (C, N)

    # ---- self.out2 on (out + actv); the add fuses into the conv prologue
    wo2, bo2 = wb(9)
    o_ref[...] = _conv3x3_cm(out1 + actv, wo2, bo2, tapmask, W)


# ----------------------------- static host-built matrices -----------------------------

def _interp_matrix_align_corners(n_in, n_out):
    if n_in == 1:
        return jnp.ones((n_out, 1), jnp.float32)
    src = jnp.arange(n_out, dtype=jnp.float32) * (n_in - 1) / (n_out - 1)
    i0 = jnp.clip(jnp.floor(src).astype(jnp.int32), 0, n_in - 2)
    frac = src - i0.astype(jnp.float32)
    return (jax.nn.one_hot(i0, n_in, dtype=jnp.float32) * (1.0 - frac)[:, None]
            + jax.nn.one_hot(i0 + 1, n_in, dtype=jnp.float32) * frac[:, None])


def _bilinear_up2_matrix(Hh, Wh):
    Ho, Wo = 2 * Hh, 2 * Wh
    uh = _interp_matrix_align_corners(Hh, Ho)                 # (Ho, Hh)
    uw = _interp_matrix_align_corners(Wh, Wo)                 # (Wo, Wh)
    U = jnp.einsum('oh,pw->ophw', uh, uw).reshape(Ho * Wo, Hh * Wh)
    return jnp.transpose(U)                                   # (Hh*Wh, Ho*Wo)


def _nearest_resize_matrix(He, We, H, W):
    hs = (jnp.arange(H) * He) // H                            # PyTorch 'nearest'
    ws = (jnp.arange(W) * We) // W
    src = (hs[:, None] * We + ws[None, :]).reshape(H * W)
    return jnp.transpose(jax.nn.one_hot(src, He * We, dtype=jnp.float32))  # (HeWe, HW)


def _tap_masks(H, W, B):
    """(9, B*H*W): 1 where tap (dy, dx) stays inside its own image, else 0."""
    h = jnp.arange(H)[:, None]
    w = jnp.arange(W)[None, :]
    rows = []
    for dy in (-1, 0, 1):
        for dx in (-1, 0, 1):
            ok = ((h + dy >= 0) & (h + dy < H) & (w + dx >= 0) & (w + dx < W))
            rows.append(jnp.tile(ok.astype(jnp.float32).reshape(1, H * W), (1, B)))
    return jnp.concatenate(rows, axis=0)


# ----------------------------- slab packers -----------------------------

def _pack_rows(blocks):
    """Stack same-width 2-D blocks with 8-row-aligned starts; return slab + offsets."""
    width = blocks[0].shape[1]
    offs, padded, r = [], [], 0
    for blk in blocks:
        offs.append(r)
        nrows = blk.shape[0]
        pad = (-nrows) % 8
        if pad:
            blk = jnp.concatenate([blk, jnp.zeros((pad, width), blk.dtype)], axis=0)
        padded.append(blk)
        r += nrows + pad
    return jnp.concatenate(padded, axis=0), offs


def _pack_params(layers):
    """layers: [(W (cout,K), b (cout,)), ...] -> slab (R, KMAX+1), bias in last col."""
    kmax = max(int(w.shape[1]) for w, _ in layers)
    offs, rows, r = [], [], 0
    for w, b in layers:
        co, k = int(w.shape[0]), int(w.shape[1])
        blk = jnp.zeros((co, kmax + 1), jnp.float32)
        blk = blk.at[:, :k].set(w)
        blk = blk.at[:, kmax].set(b)
        offs.append((r, co, k))
        pad = (-co) % 8
        if pad:
            blk = jnp.concatenate([blk, jnp.zeros((pad, kmax + 1), jnp.float32)], axis=0)
        rows.append(blk)
        r += co + pad
    return jnp.concatenate(rows, axis=0), tuple(offs), kmax


# ----------------------------- forward wrapper -----------------------------

def fcdh_forward(fuse_high, fuse_low, edge, p):
    """FCDH forward.  Inputs/outputs are NCHW (PyTorch layout)."""
    B, Cin, Hh, Wh = fuse_high.shape
    _, C, H, W = fuse_low.shape
    _, Cp, He, We = edge.shape
    assert (H, W) == (2 * Hh, 2 * Wh)
    HW = H * W
    N = B * HW
    NH = B * Hh * Wh
    NE = B * He * We

    # Channel-major with batch folded onto lanes: (C, B*H*W).
    def cm(a, h, w):
        b, c = a.shape[0], a.shape[1]
        return jnp.transpose(a.reshape(b, c, h * w), (1, 0, 2)).reshape(c, b * h * w)

    fh = cm(fuse_high, Hh, Wh)
    fl = cm(fuse_low, H, W)
    ed = cm(edge, He, We)

    eyeB = jnp.eye(B, dtype=jnp.float32)
    up_bd = jnp.kron(eyeB, _bilinear_up2_matrix(Hh, Wh))          # (B*HhWh, N)
    nn_bd = jnp.kron(eyeB, _nearest_resize_matrix(He, We, H, W))  # (B*HeWe, N)
    tapmask = _tap_masks(H, W, B)                                 # (9, N)
    bcast = jnp.kron(eyeB, jnp.ones((1, HW), jnp.float32))        # (B, N)

    cslab, (up_r0, nn_r0, mk_r0, bc_r0) = _pack_rows([up_bd, nn_bd, tapmask, bcast])
    coff = (up_r0, NH, nn_r0, NE, mk_r0, bc_r0)

    gp = p['gate']
    layers = [
        (p['conv_w'], p['conv_b']),                               # 0: self.conv
        (gp['w1l'][:, :C], gp['b1l']),                            # 1: local  1st, x half
        (gp['w1l'][:, C:], jnp.zeros_like(gp['b1l'])),            # 2: local  1st, r half
        (gp['w2l'], gp['b2l']),                                   # 3: local  2nd
        (gp['w1g'][:, :C], gp['b1g']),                            # 4: global 1st, x half
        (gp['w1g'][:, C:], jnp.zeros_like(gp['b1g'])),            # 5: global 1st, r half
        (gp['w2g'], gp['b2g']),                                   # 6: global 2nd
        (p['mlp_w'], p['mlp_b']),                                 # 7: mlp_shared
        (p['out_w'], p['out_b']),                                 # 8: self.out  (3x3)
        (p['out2_w'], p['out2_b']),                               # 9: self.out2 (3x3)
    ]
    pslab, lay, kmax = _pack_params(layers)

    def spec2d(a):
        return pl.BlockSpec(a.shape, lambda i: (0, 0))

    kern = functools.partial(_fcdh_kernel, B=B, H=H, W=W, coff=coff, lay=lay, kmax=kmax)

    # Total VMEM footprint here is ~1 MiB, well under default scoped limits;
    # set vmem_limit_bytes explicitly when scaling C/HW up (per-generation budget).
    out = pl.pallas_call(
        kern,
        out_shape=jax.ShapeDtypeStruct((C, N), jnp.float32),
        grid=(1,),
        in_specs=[spec2d(fh), spec2d(fl), spec2d(ed), spec2d(cslab), spec2d(pslab)],
        out_specs=pl.BlockSpec((C, N), lambda i: (0, 0)),
        compiler_params=pltpu.CompilerParams(dimension_semantics=("arbitrary",)),
    )(fh, fl, ed, cslab, pslab)

    return jnp.transpose(out.reshape(C, B, H, W), (1, 0, 2, 3))


# ----------------------------- parameters (folded BN) -----------------------------

def _init_conv_bn(key, cin, cout, ksize):
    """Random conv+BN (torch-like), folded (inference mode)."""
    ks = jax.random.split(key, 6)
    fan_in = cin * ksize * ksize
    if ksize == 1:
        w = jax.random.normal(ks[0], (cout, cin), jnp.float32) / jnp.sqrt(fan_in)
    else:
        # (cout, ky, kx, cin): matches _conv3x3_cm's (dy, dx, cin) tap stacking;
        # a real torch Conv2d weight (cout, cin, ky, kx) would be permuted first.
        w = jax.random.normal(ks[0], (cout, ksize, ksize, cin), jnp.float32) / jnp.sqrt(fan_in)
    b = 0.1 * jax.random.normal(ks[1], (cout,), jnp.float32)
    gamma = 1.0 + 0.1 * jax.random.normal(ks[2], (cout,), jnp.float32)
    beta = 0.1 * jax.random.normal(ks[3], (cout,), jnp.float32)
    mean = 0.1 * jax.random.normal(ks[4], (cout,), jnp.float32)
    var = 0.5 + 0.5 * jax.nn.sigmoid(jax.random.normal(ks[5], (cout,), jnp.float32))
    scale = gamma / jnp.sqrt(var + 1e-5)
    if ksize == 1:
        wf = w * scale[:, None]
    else:
        wf = (w * scale[:, None, None, None]).reshape(cout, ksize * ksize * cin)
    bf = (b - mean) * scale + beta
    return wf, bf


def init_fcdh_params(key, in_ch, out_ch, p_channel):
    inter = out_ch // 2                        # gate(channels, r=2)
    keys = jax.random.split(key, 8)
    p = {}
    p['conv_w'], p['conv_b'] = _init_conv_bn(keys[0], in_ch, out_ch, 1)        # self.conv
    gp = {}
    gp['w1l'], gp['b1l'] = _init_conv_bn(keys[1], 2 * out_ch, inter, 1)        # gate.local_att
    gp['w2l'], gp['b2l'] = _init_conv_bn(keys[2], inter, out_ch, 1)
    gp['w1g'], gp['b1g'] = _init_conv_bn(keys[3], 2 * out_ch, inter, 1)        # gate.global_att
    gp['w2g'], gp['b2g'] = _init_conv_bn(keys[4], inter, out_ch, 1)
    p['gate'] = gp
    p['mlp_w'], p['mlp_b'] = _init_conv_bn(keys[5], p_channel, out_ch, 1)      # self.mlp_shared
    p['out_w'], p['out_b'] = _init_conv_bn(keys[6], out_ch, out_ch, 3)         # self.out
    p['out2_w'], p['out2_b'] = _init_conv_bn(keys[7], out_ch, out_ch, 3)       # self.out2
    return p


# ----------------------------- pure-JAX reference (correctness check) -----------------------------

def _ref_conv1x1(x, w, b):
    y = jnp.einsum('oc,bchw->bohw', w, x, precision=jax.lax.Precision.HIGHEST)
    return _lrelu(y + b.reshape(1, -1, 1, 1))


def _ref_conv3x3(x, w9, b):
    cout = w9.shape[0]
    cin = w9.shape[1] // 9
    w = jnp.transpose(w9.reshape(cout, 3, 3, cin), (0, 3, 1, 2))       # OIHW
    y = jax.lax.conv_general_dilated(x, w, (1, 1), ((1, 1), (1, 1)),
                                     dimension_numbers=('NCHW', 'OIHW', 'NCHW'),
                                     precision=jax.lax.Precision.HIGHEST)
    return _lrelu(y + b.reshape(1, cout, 1, 1))


def fcdh_reference(fuse_high, fuse_low, edge, p):
    B, Cin, Hh, Wh = fuse_high.shape
    _, C, H, W = fuse_low.shape
    _, Cp, He, We = edge.shape
    hp = jax.lax.Precision.HIGHEST
    up = _bilinear_up2_matrix(Hh, Wh)
    nn = _nearest_resize_matrix(He, We, H, W)
    xup = jnp.einsum('bcp,pq->bcq', fuse_high.reshape(B, Cin, -1), up,
                     precision=hp).reshape(B, Cin, H, W)
    x = _ref_conv1x1(xup, p['conv_w'], p['conv_b'])
    r = fuse_low
    gp = p['gate']
    xa = jnp.concatenate([x, r], axis=1)
    xl = _ref_conv1x1(_ref_conv1x1(xa, gp['w1l'], gp['b1l']), gp['w2l'], gp['b2l'])
    m = jnp.mean(xa, axis=(2, 3), keepdims=True)
    xg = _ref_conv1x1(_ref_conv1x1(m, gp['w1g'], gp['b1g']), gp['w2g'], gp['b2g'])
    g = jax.nn.sigmoid(xl + xg)
    fe = x * g + r * (1.0 - g)
    out1 = _ref_conv3x3(fe, p['out_w'], p['out_b'])
    ed = jnp.einsum('bcp,pq->bcq', edge.reshape(B, Cp, -1), nn,
                    precision=hp).reshape(B, Cp, H, W)
    actv = _ref_conv1x1(ed, p['mlp_w'], p['mlp_b'])
    return _ref_conv3x3(out1 + actv, p['out2_w'], p['out2_b'])


# ----------------------------- demo -----------------------------

if __name__ == "__main__":
    key = jax.random.PRNGKey(0)
    k_hi, k_lo, k_ed, k_par = jax.random.split(key, 4)

    B, in_ch, out_ch, p_channel = 2, 16, 8, 4
    Hh, Wh = 8, 8          # fuse_high spatial (x2 -> 16x16)
    H, W = 16, 16          # fuse_low / output spatial
    He, We = 8, 8          # edge spatial (nearest-resized to 16x16 in-kernel)

    fuse_high = jax.random.normal(k_hi, (B, in_ch, Hh, Wh), jnp.float32)   # NCHW
    fuse_low = jax.random.normal(k_lo, (B, out_ch, H, W), jnp.float32)
    edge = jax.random.normal(k_ed, (B, p_channel, He, We), jnp.float32)

    params = init_fcdh_params(k_par, in_ch, out_ch, p_channel)

    out = jax.jit(fcdh_forward)(fuse_high, fuse_low, edge, params)
    jax.block_until_ready(out)
    assert out.shape == (B, out_ch, H, W)

    ref = fcdh_reference(fuse_high, fuse_low, edge, params)
    jax.block_until_ready(ref)
    max_err = float(jnp.max(jnp.abs(out - ref)))
    assert max_err < 2e-2, f"kernel/reference mismatch: max abs err {max_err}"
    print("KERNEL_OK")
</pallas_src>

<mosaic_0001>
module attributes {stable_mosaic.version = 11 : i64} {
  func.func @_fcdh_kernel(%arg0: i32, %arg1: memref<16x128xf32, #tpu.memory_space<vmem>>, %arg2: memref<8x512xf32, #tpu.memory_space<vmem>>, %arg3: memref<4x128xf32, #tpu.memory_space<vmem>>, %arg4: memref<280x512xf32, #tpu.memory_space<vmem>>, %arg5: memref<80x73xf32, #tpu.memory_space<vmem>>, %arg6: memref<8x512xf32, #tpu.memory_space<vmem>>) attributes {dimension_semantics = [#tpu.dimension_semantics<arbitrary>], iteration_bounds = array<i64: 1>, scalar_prefetch = 0 : i64, scratch_operands = 0 : i64, tpu.core_type = #tpu.core_type<tc>, window_params = [{pipeline_mode = #tpu.pipeline_mode<synchronous>, transform_indices = @transform_0, window_bounds = array<i64: 16, 128>}, {pipeline_mode = #tpu.pipeline_mode<synchronous>, transform_indices = @transform_1, window_bounds = array<i64: 8, 512>}, {pipeline_mode = #tpu.pipeline_mode<synchronous>, transform_indices = @transform_2, window_bounds = array<i64: 4, 128>}, {pipeline_mode = #tpu.pipeline_mode<synchronous>, transform_indices = @transform_3, window_bounds = array<i64: 280, 512>}, {pipeline_mode = #tpu.pipeline_mode<synchronous>, transform_indices = @transform_4, window_bounds = array<i64: 80, 73>}, {pipeline_mode = #tpu.pipeline_mode<synchronous>, transform_indices = @transform_5, window_bounds = array<i64: 8, 512>}]} {
    %c0 = arith.constant 0 : index
    %c0_0 = arith.constant 0 : index
    %0 = vector.load %arg4[%c0, %c0_0] : memref<280x512xf32, #tpu.memory_space<vmem>>, vector<128x512xf32>
    %c128 = arith.constant 128 : index
    %c0_1 = arith.constant 0 : index
    %1 = vector.load %arg4[%c128, %c0_1] : memref<280x512xf32, #tpu.memory_space<vmem>>, vector<128x512xf32>
    %c256 = arith.constant 256 : index
    %c0_2 = arith.constant 0 : index
    %2 = vector.load %arg4[%c256, %c0_2] : memref<280x512xf32, #tpu.memory_space<vmem>>, vector<9x512xf32>
    %c272 = arith.constant 272 : index
    %c0_3 = arith.constant 0 : index
    %3 = vector.load %arg4[%c272, %c0_3] : memref<280x512xf32, #tpu.memory_space<vmem>>, vector<2x512xf32>
    %c0_4 = arith.constant 0 : index
    %c0_5 = arith.constant 0 : index
    %4 = vector.load %arg5[%c0_4, %c0_5] : memref<80x73xf32, #tpu.memory_space<vmem>>, vector<8x16xf32>
    %c0_6 = arith.constant 0 : index
    %c72 = arith.constant 72 : index
    %5 = vector.load %arg5[%c0_6, %c72] : memref<80x73xf32, #tpu.memory_space<vmem>>, vector<8x1xf32>
    %c0_7 = arith.constant 0 : index
    %c0_8 = arith.constant 0 : index
    %6 = vector.load %arg1[%c0_7, %c0_8] : memref<16x128xf32, #tpu.memory_space<vmem>>, vector<16x128xf32>
    %cst = arith.constant dense<0.000000e+00> : vector<8x128xf32>
    %7 = tpu.matmul %4, %6, %cst {dimension_numbers = #tpu.dot_dimension_numbers<[1], [0], [0], [1], [0, 0, 1, 1], [], []>} : vector<8x16xf32>, vector<16x128xf32>, vector<8x128xf32> -> vector<8x128xf32>
    %cst_9 = arith.constant dense<0.000000e+00> : vector<8x512xf32>
    %8 = tpu.matmul %7, %0, %cst_9 {dimension_numbers = #tpu.dot_dimension_numbers<[1], [0], [0], [1], [0, 0, 1, 1], [], []>} : vector<8x128xf32>, vector<128x512xf32>, vector<8x512xf32> -> vector<8x512xf32>
    %9 = vector.broadcast %5 : vector<8x1xf32> to vector<8x512xf32>
    %10 = arith.addf %8, %9 : vector<8x512xf32>
    %cst_10 = arith.constant 0.00999999977 : f32
    %11 = vector.broadcast %cst_10 : f32 to vector<8x512xf32>
    %12 = arith.mulf %11, %10 : vector<8x512xf32>
    %13 = arith.maximumf %10, %12 : vector<8x512xf32>
    %c0_11 = arith.constant 0 : index
    %c0_12 = arith.constant 0 : index
    %14 = vector.load %arg2[%c0_11, %c0_12] : memref<8x512xf32, #tpu.memory_space<vmem>>, vector<8x512xf32>
    %c8 = arith.constant 8 : index
    %c0_13 = arith.constant 0 : index
    %15 = vector.load %arg5[%c8, %c0_13] : memref<80x73xf32, #tpu.memory_space<vmem>>, vector<4x8xf32>
    %c8_14 = arith.constant 8 : index
    %c72_15 = arith.constant 72 : index
    %16 = vector.load %arg5[%c8_14, %c72_15] : memref<80x73xf32, #tpu.memory_space<vmem>>, vector<4x1xf32>
    %c16 = arith.constant 16 : index
    %c0_16 = arith.constant 0 : index
    %17 = vector.load %arg5[%c16, %c0_16] : memref<80x73xf32, #tpu.memory_space<vmem>>, vector<4x8xf32>
    %c24 = arith.constant 24 : index
    %c0_17 = arith.constant 0 : index
    %18 = vector.load %arg5[%c24, %c0_17] : memref<80x73xf32, #tpu.memory_space<vmem>>, vector<8x4xf32>
    %c24_18 = arith.constant 24 : index
    %c72_19 = arith.constant 72 : index
    %19 = vector.load %arg5[%c24_18, %c72_19] : memref<80x73xf32, #tpu.memory_space<vmem>>, vector<8x1xf32>
    %cst_20 = arith.constant dense<0.000000e+00> : vector<4x512xf32>
    %20 = tpu.matmul %15, %13, %cst_20 {dimension_numbers = #tpu.dot_dimension_numbers<[1], [0], [0], [1], [0, 0, 1, 1], [], []>} : vector<4x8xf32>, vector<8x512xf32>, vector<4x512xf32> -> vector<4x512xf32>
    %cst_21 = arith.constant dense<0.000000e+00> : vector<4x512xf32>
    %21 = tpu.matmul %17, %14, %cst_21 {dimension_numbers = #tpu.dot_dimension_numbers<[1], [0], [0], [1], [0, 0, 1, 1], [], []>} : vector<4x8xf32>, vector<8x512xf32>, vector<4x512xf32> -> vector<4x512xf32>
    %22 = arith.addf %20, %21 : vector<4x512xf32>
    %23 = vector.broadcast %16 : vector<4x1xf32> to vector<4x512xf32>
    %24 = arith.addf %22, %23 : vector<4x512xf32>
    %cst_22 = arith.constant 0.00999999977 : f32
    %25 = vector.broadcast %cst_22 : f32 to vector<4x512xf32>
    %26 = arith.mulf %25, %24 : vector<4x512xf32>
    %27 = arith.maximumf %24, %26 : vector<4x512xf32>
    %cst_23 = arith.constant dense<0.000000e+00> : vector<8x512xf32>
    %28 = tpu.matmul %18, %27, %cst_23 {dimension_numbers = #tpu.dot_dimension_numbers<[1], [0], [0], [1], [0, 0, 1, 1], [], []>} : vector<8x4xf32>, vector<4x512xf32>, vector<8x512xf32> -> vector<8x512xf32>
    %29 = vector.broadcast %19 : vector<8x1xf32> to vector<8x512xf32>
    %30 = arith.addf %28, %29 : vector<8x512xf32>
    %cst_24 = arith.constant 0.00999999977 : f32
    %31 = vector.broadcast %cst_24 : f32 to vector<8x512xf32>
    %32 = arith.mulf %31, %30 : vector<8x512xf32>
    %33 = arith.maximumf %30, %32 : vector<8x512xf32>
    %c32 = arith.constant 32 : index
    %c0_25 = arith.constant 0 : index
    %34 = vector.load %arg5[%c32, %c0_25] : memref<80x73xf32, #tpu.memory_space<vmem>>, vector<4x8xf32>
    %c32_26 = arith.constant 32 : index
    %c72_27 = arith.constant 72 : index
    %35 = vector.load %arg5[%c32_26, %c72_27] : memref<80x73xf32, #tpu.memory_space<vmem>>, vector<4x1xf32>
    %c40 = arith.constant 40 : index
    %c0_28 = arith.constant 0 : index
    %36 = vector.load %arg5[%c40, %c0_28] : memref<80x73xf32, #tpu.memory_space<vmem>>, vector<4x8xf32>
    %c48 = arith.constant 48 : index
    %c0_29 = arith.constant 0 : index
    %37 = vector.load %arg5[%c48, %c0_29] : memref<80x73xf32, #tpu.memory_space<vmem>>, vector<8x4xf32>
    %c48_30 = arith.constant 48 : index
    %c72_31 = arith.constant 72 : index
    %38 = vector.load %arg5[%c48_30, %c72_31] : memref<80x73xf32, #tpu.memory_space<vmem>>, vector<8x1xf32>
    %39 = vector.extract_strided_slice %13 {offsets = [0, 0], sizes = [8, 256], strides = [1, 1]} : vector<8x512xf32> to vector<8x256xf32>
    %cst_32 = arith.constant dense<0.000000e+00> : vector<8xf32>
    %40 = vector.multi_reduction <add>, %39, %cst_32 [1] : vector<8x256xf32> to vector<8xf32>
    %41 = vector.shape_cast %40 : vector<8xf32> to vector<8x1xf32>
    %cst_33 = arith.constant 2.560000e+02 : f32
    %42 = vector.broadcast %cst_33 : f32 to vector<8x1xf32>
    %43 = arith.divf %41, %42 : vector<8x1xf32>
    %44 = vector.extract_strided_slice %13 {offsets = [0, 256], sizes = [8, 256], strides = [1, 1]} : vector<8x512xf32> to vector<8x256xf32>
    %cst_34 = arith.constant dense<0.000000e+00> : vector<8xf32>
    %45 = vector.multi_reduction <add>, %44, %cst_34 [1] : vector<8x256xf32> to vector<8xf32>
    %46 = vector.shape_cast %45 : vector<8xf32> to vector<8x1xf32>
    %cst_35 = arith.constant 2.560000e+02 : f32
    %47 = vector.broadcast %cst_35 : f32 to vector<8x1xf32>
    %48 = arith.divf %46, %47 : vector<8x1xf32>
    %49 = tpu.concatenate %43, %48 in 1 : vector<8x1xf32>, vector<8x1xf32> -> vector<8x2xf32>
    %50 = vector.extract_strided_slice %14 {offsets = [0, 0], sizes = [8, 256], strides = [1, 1]} : vector<8x512xf32> to vector<8x256xf32>
    %cst_36 = arith.constant dense<0.000000e+00> : vector<8xf32>
    %51 = vector.multi_reduction <add>, %50, %cst_36 [1] : vector<8x256xf32> to vector<8xf32>
    %52 = vector.shape_cast %51 : vector<8xf32> to vector<8x1xf32>
    %cst_37 = arith.constant 2.560000e+02 : f32
    %53 = vector.broadcast %cst_37 : f32 to vector<8x1xf32>
    %54 = arith.divf %52, %53 : vector<8x1xf32>
    %55 = vector.extract_strided_slice %14 {offsets = [0, 256], sizes = [8, 256], strides = [1, 1]} : vector<8x512xf32> to vector<8x256xf32>
    %cst_38 = arith.constant dense<0.000000e+00> : vector<8xf32>
    %56 = vector.multi_reduction <add>, %55, %cst_38 [1] : vector<8x256xf32> to vector<8xf32>
    %57 = vector.shape_cast %56 : vector<8xf32> to vector<8x1xf32>
    %cst_39 = arith.constant 2.560000e+02 : f32
    %58 = vector.broadcast %cst_39 : f32 to vector<8x1xf32>
    %59 = arith.divf %57, %58 : vector<8x1xf32>
    %60 = tpu.concatenate %54, %59 in 1 : vector<8x1xf32>, vector<8x1xf32> -> vector<8x2xf32>
    %cst_40 = arith.constant dense<0.000000e+00> : vector<4x2xf32>
    %61 = tpu.matmul %34, %49, %cst_40 {dimension_numbers = #tpu.dot_dimension_numbers<[1], [0], [0], [1], [0, 0, 1, 1], [], []>} : vector<4x8xf32>, vector<8x2xf32>, vector<4x2xf32> -> vector<4x2xf32>
    %cst_41 = arith.constant dense<0.000000e+00> : vector<4x2xf32>
    %62 = tpu.matmul %36, %60, %cst_41 {dimension_numbers = #tpu.dot_dimension_numbers<[1], [0], [0], [1], [0, 0, 1, 1], [], []>} : vector<4x8xf32>, vector<8x2xf32>, vector<4x2xf32> -> vector<4x2xf32>
    %63 = arith.addf %61, %62 : vector<4x2xf32>
    %64 = vector.broadcast %35 : vector<4x1xf32> to vector<4x2xf32>
    %65 = arith.addf %63, %64 : vector<4x2xf32>
    %cst_42 = arith.constant 0.00999999977 : f32
    %66 = vector.broadcast %cst_42 : f32 to vector<4x2xf32>
    %67 = arith.mulf %66, %65 : vector<4x2xf32>
    %68 = arith.maximumf %65, %67 : vector<4x2xf32>
    %cst_43 = arith.constant dense<0.000000e+00> : vector<8x2xf32>
    %69 = tpu.matmul %37, %68, %cst_43 {dimension_numbers = #tpu.dot_dimension_numbers<[1], [0], [0], [1], [0, 0, 1, 1], [], []>} : vector<8x4xf32>, vector<4x2xf32>, vector<8x2xf32> -> vector<8x2xf32>
    %70 = vector.broadcast %38 : vector<8x1xf32> to vector<8x2xf32>
    %71 = arith.addf %69, %70 : vector<8x2xf32>
    %cst_44 = arith.constant 0.00999999977 : f32
    %72 = vector.broadcast %cst_44 : f32 to vector<8x2xf32>
    %73 = arith.mulf %72, %71 : vector<8x2xf32>
    %74 = arith.maximumf %71, %73 : vector<8x2xf32>
    %cst_45 = arith.constant dense<0.000000e+00> : vector<8x512xf32>
    %75 = tpu.matmul %74, %3, %cst_45 {dimension_numbers = #tpu.dot_dimension_numbers<[1], [0], [0], [1], [0, 0, 1, 1], [], []>} : vector<8x2xf32>, vector<2x512xf32>, vector<8x512xf32> -> vector<8x512xf32>
    %76 = arith.addf %33, %75 : vector<8x512xf32>
    %77 = arith.negf %76 : vector<8x512xf32>
    %78 = math.exp %77 : vector<8x512xf32>
    %cst_46 = arith.constant 1.000000e+00 : f32
    %79 = vector.broadcast %cst_46 : f32 to vector<8x512xf32>
    %80 = arith.addf %79, %78 : vector<8x512xf32>
    %81 = arith.divf %79, %80 : vector<8x512xf32>
    %82 = arith.mulf %13, %81 : vector<8x512xf32>
    %cst_47 = arith.constant 1.000000e+00 : f32
    %83 = vector.broadcast %cst_47 : f32 to vector<8x512xf32>
    %84 = arith.subf %83, %81 : vector<8x512xf32>
    %85 = arith.mulf %14, %84 : vector<8x512xf32>
    %86 = arith.addf %82, %85 : vector<8x512xf32>
    %c64 = arith.constant 64 : index
    %c0_48 = arith.constant 0 : index
    %87 = vector.load %arg5[%c64, %c0_48] : memref<80x73xf32, #tpu.memory_space<vmem>>, vector<8x72xf32>
    %c64_49 = arith.constant 64 : index
    %c72_50 = arith.constant 72 : index
    %88 = vector.load %arg5[%c64_49, %c72_50] : memref<80x73xf32, #tpu.memory_space<vmem>>, vector<8x1xf32>
    %c17_i32 = arith.constant 17 : i32
    %89 = tpu.dynamic_rotate %86 by %c17_i32 dim 1 : vector<8x512xf32>, i32 -> vector<8x512xf32>
    %90 = vector.extract_strided_slice %2 {offsets = [0, 0], sizes = [1, 512], strides = [1, 1]} : vector<9x512xf32> to vector<1x512xf32>
    %91 = vector.broadcast %90 : vector<1x512xf32> to vector<8x512xf32>
    %92 = arith.mulf %89, %91 : vector<8x512xf32>
    %c16_i32 = arith.constant 16 : i32
    %93 = tpu.dynamic_rotate %86 by %c16_i32 dim 1 : vector<8x512xf32>, i32 -> vector<8x512xf32>
    %94 = vector.extract_strided_slice %2 {offsets = [1, 0], sizes = [1, 512], strides = [1, 1]} : vector<9x512xf32> to vector<1x512xf32>
    %95 = vector.broadcast %94 : vector<1x512xf32> to vector<8x512xf32>
    %96 = arith.mulf %93, %95 : vector<8x512xf32>
    %c15_i32 = arith.constant 15 : i32
    %97 = tpu.dynamic_rotate %86 by %c15_i32 dim 1 : vector<8x512xf32>, i32 -> vector<8x512xf32>
    %98 = vector.extract_strided_slice %2 {offsets = [2, 0], sizes = [1, 512], strides = [1, 1]} : vector<9x512xf32> to vector<1x512xf32>
    %99 = vector.broadcast %98 : vector<1x512xf32> to vector<8x512xf32>
    %100 = arith.mulf %97, %99 : vector<8x512xf32>
    %c1_i32 = arith.constant 1 : i32
    %101 = tpu.dynamic_rotate %86 by %c1_i32 dim 1 : vector<8x512xf32>, i32 -> vector<8x512xf32>
    %102 = vector.extract_strided_slice %2 {offsets = [3, 0], sizes = [1, 512], strides = [1, 1]} : vector<9x512xf32> to vector<1x512xf32>
    %103 = vector.broadcast %102 : vector<1x512xf32> to vector<8x512xf32>
    %104 = arith.mulf %101, %103 : vector<8x512xf32>
    %c511_i32 = arith.constant 511 : i32
    %105 = tpu.dynamic_rotate %86 by %c511_i32 dim 1 : vector<8x512xf32>, i32 -> vector<8x512xf32>
    %106 = vector.extract_strided_slice %2 {offsets = [5, 0], sizes = [1, 512], strides = [1, 1]} : vector<9x512xf32> to vector<1x512xf32>
    %107 = vector.broadcast %106 : vector<1x512xf32> to vector<8x512xf32>
    %108 = arith.mulf %105, %107 : vector<8x512xf32>
    %c497_i32 = arith.constant 497 : i32
    %109 = tpu.dynamic_rotate %86 by %c497_i32 dim 1 : vector<8x512xf32>, i32 -> vector<8x512xf32>
    %110 = vector.extract_strided_slice %2 {offsets = [6, 0], sizes = [1, 512], strides = [1, 1]} : vector<9x512xf32> to vector<1x512xf32>
    %111 = vector.broadcast %110 : vector<1x512xf32> to vector<8x512xf32>
    %112 = arith.mulf %109, %111 : vector<8x512xf32>
    %c496_i32 = arith.constant 496 : i32
    %113 = tpu.dynamic_rotate %86 by %c496_i32 dim 1 : vector<8x512xf32>, i32 -> vector<8x512xf32>
    %114 = vector.extract_strided_slice %2 {offsets = [7, 0], sizes = [1, 512], strides = [1, 1]} : vector<9x512xf32> to vector<1x512xf32>
    %115 = vector.broadcast %114 : vector<1x512xf32> to vector<8x512xf32>
    %116 = arith.mulf %113, %115 : vector<8x512xf32>
    %c495_i32 = arith.constant 495 : i32
    %117 = tpu.dynamic_rotate %86 by %c495_i32 dim 1 : vector<8x512xf32>, i32 -> vector<8x512xf32>
    %118 = vector.extract_strided_slice %2 {offsets = [8, 0], sizes = [1, 512], strides = [1, 1]} : vector<9x512xf32> to vector<1x512xf32>
    %119 = vector.broadcast %118 : vector<1x512xf32> to vector<8x512xf32>
    %120 = arith.mulf %117, %119 : vector<8x512xf32>
    %121 = tpu.concatenate %92, %96, %100, %104, %86, %108, %112, %116, %120 in 0 : vector<8x512xf32>, vector<8x512xf32>, vector<8x512xf32>, vector<8x512xf32>, vector<8x512xf32>, vector<8x512xf32>, vector<8x512xf32>, vector<8x512xf32>, vector<8x512xf32> -> vector<72x512xf32>
    %cst_51 = arith.constant dense<0.000000e+00> : vector<8x512xf32>
    %122 = tpu.matmul %87, %121, %cst_51 {dimension_numbers = #tpu.dot_dimension_numbers<[1], [0], [0], [1], [0, 0, 1, 1], [], []>} : vector<8x72xf32>, vector<72x512xf32>, vector<8x512xf32> -> vector<8x512xf32>
    %123 = vector.broadcast %88 : vector<8x1xf32> to vector<8x512xf32>
    %124 = arith.addf %122, %123 : vector<8x512xf32>
    %cst_52 = arith.constant 0.00999999977 : f32
    %125 = vector.broadcast %cst_52 : f32 to vector<8x512xf32>
    %126 = arith.mulf %125, %124 : vector<8x512xf32>
    %127 = arith.maximumf %124, %126 : vector<8x512xf32>
    %c56 = arith.constant 56 : index
    %c0_53 = arith.constant 0 : index
    %128 = vector.load %arg5[%c56, %c0_53] : memref<80x73xf32, #tpu.memory_space<vmem>>, vector<8x4xf32>
    %c56_54 = arith.constant 56 : index
    %c72_55 = arith.constant 72 : index
    %129 = vector.load %arg5[%c56_54, %c72_55] : memref<80x73xf32, #tpu.memory_space<vmem>>, vector<8x1xf32>
    %c0_56 = arith.constant 0 : index
    %c0_57 = arith.constant 0 : index
    %130 = vector.load %arg3[%c0_56, %c0_57] : memref<4x128xf32, #tpu.memory_space<vmem>>, vector<4x128xf32>
    %cst_58 = arith.constant dense<0.000000e+00> : vector<4x512xf32>
    %131 = tpu.matmul %130, %1, %cst_58 {dimension_numbers = #tpu.dot_dimension_numbers<[1], [0], [0], [1], [0, 0, 1, 1], [], []>} : vector<4x128xf32>, vector<128x512xf32>, vector<4x512xf32> -> vector<4x512xf32>
    %cst_59 = arith.constant dense<0.000000e+00> : vector<8x512xf32>
    %132 = tpu.matmul %128, %131, %cst_59 {dimension_numbers = #tpu.dot_dimension_numbers<[1], [0], [0], [1], [0, 0, 1, 1], [], []>} : vector<8x4xf32>, vector<4x512xf32>, vector<8x512xf32> -> vector<8x512xf32>
    %133 = vector.broadcast %129 : vector<8x1xf32> to vector<8x512xf32>
    %134 = arith.addf %132, %133 : vector<8x512xf32>
    %cst_60 = arith.constant 0.00999999977 : f32
    %135 = vector.broadcast %cst_60 : f32 to vector<8x512xf32>
    %136 = arith.mulf %135, %134 : vector<8x512xf32>
    %137 = arith.maximumf %134, %136 : vector<8x512xf32>
    %c72_61 = arith.constant 72 : index
    %c0_62 = arith.constant 0 : index
    %138 = vector.load %arg5[%c72_61, %c0_62] : memref<80x73xf32, #tpu.memory_space<vmem>>, vector<8x72xf32>
    %c72_63 = arith.constant 72 : index
    %c72_64 = arith.constant 72 : index
    %139 = vector.load %arg5[%c72_63, %c72_64] : memref<80x73xf32, #tpu.memory_space<vmem>>, vector<8x1xf32>
    %140 = arith.addf %127, %137 : vector<8x512xf32>
    %c17_i32_65 = arith.constant 17 : i32
    %141 = tpu.dynamic_rotate %140 by %c17_i32_65 dim 1 : vector<8x512xf32>, i32 -> vector<8x512xf32>
    %142 = vector.extract_strided_slice %2 {offsets = [0, 0], sizes = [1, 512], strides = [1, 1]} : vector<9x512xf32> to vector<1x512xf32>
    %143 = vector.broadcast %142 : vector<1x512xf32> to vector<8x512xf32>
    %144 = arith.mulf %141, %143 : vector<8x512xf32>
    %c16_i32_66 = arith.constant 16 : i32
    %145 = tpu.dynamic_rotate %140 by %c16_i32_66 dim 1 : vector<8x512xf32>, i32 -> vector<8x512xf32>
    %146 = vector.extract_strided_slice %2 {offsets = [1, 0], sizes = [1, 512], strides = [1, 1]} : vector<9x512xf32> to vector<1x512xf32>
    %147 = vector.broadcast %146 : vector<1x512xf32> to vector<8x512xf32>
    %148 = arith.mulf %145, %147 : vector<8x512xf32>
    %c15_i32_67 = arith.constant 15 : i32
    %149 = tpu.dynamic_rotate %140 by %c15_i32_67 dim 1 : vector<8x512xf32>, i32 -> vector<8x512xf32>
    %150 = vector.extract_strided_slice %2 {offsets = [2, 0], sizes = [1, 512], strides = [1, 1]} : vector<9x512xf32> to vector<1x512xf32>
    %151 = vector.broadcast %150 : vector<1x512xf32> to vector<8x512xf32>
    %152 = arith.mulf %149, %151 : vector<8x512xf32>
    %c1_i32_68 = arith.constant 1 : i32
    %153 = tpu.dynamic_rotate %140 by %c1_i32_68 dim 1 : vector<8x512xf32>, i32 -> vector<8x512xf32>
    %154 = vector.extract_strided_slice %2 {offsets = [3, 0], sizes = [1, 512], strides = [1, 1]} : vector<9x512xf32> to vector<1x512xf32>
    %155 = vector.broadcast %154 : vector<1x512xf32> to vector<8x512xf32>
    %156 = arith.mulf %153, %155 : vector<8x512xf32>
    %c511_i32_69 = arith.constant 511 : i32
    %157 = tpu.dynamic_rotate %140 by %c511_i32_69 dim 1 : vector<8x512xf32>, i32 -> vector<8x512xf32>
    %158 = vector.extract_strided_slice %2 {offsets = [5, 0], sizes = [1, 512], strides = [1, 1]} : vector<9x512xf32> to vector<1x512xf32>
    %159 = vector.broadcast %158 : vector<1x512xf32> to vector<8x512xf32>
    %160 = arith.mulf %157, %159 : vector<8x512xf32>
    %c497_i32_70 = arith.constant 497 : i32
    %161 = tpu.dynamic_rotate %140 by %c497_i32_70 dim 1 : vector<8x512xf32>, i32 -> vector<8x512xf32>
    %162 = vector.extract_strided_slice %2 {offsets = [6, 0], sizes = [1, 512], strides = [1, 1]} : vector<9x512xf32> to vector<1x512xf32>
    %163 = vector.broadcast %162 : vector<1x512xf32> to vector<8x512xf32>
    %164 = arith.mulf %161, %163 : vector<8x512xf32>
    %c496_i32_71 = arith.constant 496 : i32
    %165 = tpu.dynamic_rotate %140 by %c496_i32_71 dim 1 : vector<8x512xf32>, i32 -> vector<8x512xf32>
    %166 = vector.extract_strided_slice %2 {offsets = [7, 0], sizes = [1, 512], strides = [1, 1]} : vector<9x512xf32> to vector<1x512xf32>
    %167 = vector.broadcast %166 : vector<1x512xf32> to vector<8x512xf32>
    %168 = arith.mulf %165, %167 : vector<8x512xf32>
    %c495_i32_72 = arith.constant 495 : i32
    %169 = tpu.dynamic_rotate %140 by %c495_i32_72 dim 1 : vector<8x512xf32>, i32 -> vector<8x512xf32>
    %170 = vector.extract_strided_slice %2 {offsets = [8, 0], sizes = [1, 512], strides = [1, 1]} : vector<9x512xf32> to vector<1x512xf32>
    %171 = vector.broadcast %170 : vector<1x512xf32> to vector<8x512xf32>
    %172 = arith.mulf %169, %171 : vector<8x512xf32>
    %173 = tpu.concatenate %144, %148, %152, %156, %140, %160, %164, %168, %172 in 0 : vector<8x512xf32>, vector<8x512xf32>, vector<8x512xf32>, vector<8x512xf32>, vector<8x512xf32>, vector<8x512xf32>, vector<8x512xf32>, vector<8x512xf32>, vector<8x512xf32> -> vector<72x512xf32>
    %cst_73 = arith.constant dense<0.000000e+00> : vector<8x512xf32>
    %174 = tpu.matmul %138, %173, %cst_73 {dimension_numbers = #tpu.dot_dimension_numbers<[1], [0], [0], [1], [0, 0, 1, 1], [], []>} : vector<8x72xf32>, vector<72x512xf32>, vector<8x512xf32> -> vector<8x512xf32>
    %175 = vector.broadcast %139 : vector<8x1xf32> to vector<8x512xf32>
    %176 = arith.addf %174, %175 : vector<8x512xf32>
    %cst_74 = arith.constant 0.00999999977 : f32
    %177 = vector.broadcast %cst_74 : f32 to vector<8x512xf32>
    %178 = arith.mulf %177, %176 : vector<8x512xf32>
    %179 = arith.maximumf %176, %178 : vector<8x512xf32>
    %c0_75 = arith.constant 0 : index
    %c0_76 = arith.constant 0 : index
    %180 = vector.load %arg6[%c0_75, %c0_76] : memref<8x512xf32, #tpu.memory_space<vmem>>, vector<8x512xf32>
    tpu.vector_store %arg6[%c0_75, %c0_76], %179 {strides = array<i32>} : memref<8x512xf32, #tpu.memory_space<vmem>>, vector<8x512xf32>,
    return
  }
  func.func @transform_0(%arg0: i32) -> (i32, i32) {
    %c0_i32 = arith.constant 0 : i32
    %c0_i32_0 = arith.constant 0 : i32
    %c0_i32_1 = arith.constant 0 : i32
    return %c0_i32, %c0_i32_0 : i32, i32
  }
  func.func @transform_1(%arg0: i32) -> (i32, i32) {
    %c0_i32 = arith.constant 0 : i32
    %c0_i32_0 = arith.constant 0 : i32
    %c0_i32_1 = arith.constant 0 : i32
    return %c0_i32, %c0_i32_0 : i32, i32
  }
  func.func @transform_2(%arg0: i32) -> (i32, i32) {
    %c0_i32 = arith.constant 0 : i32
    %c0_i32_0 = arith.constant 0 : i32
    %c0_i32_1 = arith.constant 0 : i32
    return %c0_i32, %c0_i32_0 : i32, i32
  }
  func.func @transform_3(%arg0: i32) -> (i32, i32) {
    %c0_i32 = arith.constant 0 : i32
    %c0_i32_0 = arith.constant 0 : i32
    %c0_i32_1 = arith.constant 0 : i32
    return %c0_i32, %c0_i32_0 : i32, i32
  }
  func.func @transform_4(%arg0: i32) -> (i32, i32) {
    %c0_i32 = arith.constant 0 : i32
    %c0_i32_0 = arith.constant 0 : i32
    %c0_i32_1 = arith.constant 0 : i32
    return %c0_i32, %c0_i32_0 : i32, i32
  }
  func.func @transform_5(%arg0: i32) -> (i32, i32) {
    %c0_i32 = arith.constant 0 : i32
    %c0_i32_0 = arith.constant 0 : i32
    %c0_i32_1 = arith.constant 0 : i32
    return %c0_i32, %c0_i32_0 : i32, i32
  }
}

</mosaic_0001>

<llo_original>
// kernel: fcdh_forward.1
$region0: #{fcdh_forward.1}
  #allocation0 [shape = 'u32[]', space=smem, size = 0x4, offset = 0x4, fixed_abs, tag = 'smem constant byte address 0x4 - core index']
  #allocation1 [shape = 'u32[144,128]{1,0:T(1,128)}', space=vmem, size = 0x12000, scoped, tag = 'internal scratch']
  %s0 = inlined_call_operand.vmem [shape: f32[16,128], index: 0, kind: input, shape index: {}]
  %s1 = inlined_call_operand.vmem [shape: f32[8,512], index: 1, kind: input, shape index: {}]
  %s2 = inlined_call_operand.vmem [shape: f32[4,128], index: 2, kind: input, shape index: {}]
  %s3 = inlined_call_operand.vmem [shape: f32[280,512], index: 3, kind: input, shape index: {}]
  %s4 = inlined_call_operand.vmem [shape: f32[80,73], index: 4, kind: input, shape index: {}]
  %s5 = inlined_call_operand.vmem [shape: f32[8,512], index: 5, kind: output, shape index: {}]
  %s6 = sld [smem:[#allocation0]]
  $region30: #{fcdh_forward.1} parent=0
    _
  %s8 = ssub.s32 1, %s6
  %s9 = scalar_select 0, %s8, %s6
  // Predicated region
  $region2: #{fcdh_forward.1} parent=0 // pred_check
    _
  $region3: #{fcdh_forward.1} parent=0 // pred_check_branch
    %11 = sbr.rel (0) target = $region5
  $region4: #{fcdh_forward.1} parent=0 // pred_region
    _
  $region5: #{fcdh_forward.1} parent=0 // pred_fallthru
    _
  // Predicated region
  $region6: #{fcdh_forward.1} parent=0 // pred_check
    _
  $region7: #{fcdh_forward.1} parent=0 // pred_check_branch
    %13 = sbr.rel (0) target = $region9
  $region8: #{fcdh_forward.1} parent=0 // pred_region
    _
  $region9: #{fcdh_forward.1} parent=0 // pred_fallthru
    _
  // Predicated region
  $region10: #{fcdh_forward.1} parent=0 // pred_check
    _
  $region11: #{fcdh_forward.1} parent=0 // pred_check_branch
    %15 = sbr.rel (0) target = $region13
  $region12: #{fcdh_forward.1} parent=0 // pred_region
    _
  $region13: #{fcdh_forward.1} parent=0 // pred_fallthru
    _
  // Predicated region
  $region14: #{fcdh_forward.1} parent=0 // pred_check
    _
  $region15: #{fcdh_forward.1} parent=0 // pred_check_branch
    %17 = sbr.rel (0) target = $region17
  $region16: #{fcdh_forward.1} parent=0 // pred_region
    _
  $region17: #{fcdh_forward.1} parent=0 // pred_fallthru
    _
  // Predicated region
  $region18: #{fcdh_forward.1} parent=0 // pred_check
    _
  $region19: #{fcdh_forward.1} parent=0 // pred_check_branch
    %19 = sbr.rel (0) target = $region21
  $region20: #{fcdh_forward.1} parent=0 // pred_region
    _
  $region21: #{fcdh_forward.1} parent=0 // pred_fallthru
    _
  %v20 = vld [vmem:[%s3] sm:$0xff]
  %v21 = vld [vmem:[%s3 + $0x8] sm:$0xff]
  %v22 = vld [vmem:[%s3 + $0x10] sm:$0xff]
  %v23 = vld [vmem:[%s3 + $0x18] sm:$0xff]
  %v24 = vld [vmem:[%s3 + $0x20] sm:$0xff]
  %v25 = vld [vmem:[%s3 + $0x28] sm:$0xff]
  %v26 = vld [vmem:[%s3 + $0x30] sm:$0xff]
  %v27 = vld [vmem:[%s3 + $0x38] sm:$0xff]
  %v28 = vld [vmem:[%s3 + $0x40] sm:$0xff]
  %v29 = vld [vmem:[%s3 + $0x48] sm:$0xff]
  %v30 = vld [vmem:[%s3 + $0x50] sm:$0xff]
  %v31 = vld [vmem:[%s3 + $0x58] sm:$0xff]
  %v32 = vld [vmem:[%s3 + $0x60] sm:$0xff]
  %v33 = vld [vmem:[%s3 + $0x68] sm:$0xff]
  %v34 = vld [vmem:[%s3 + $0x70] sm:$0xff]
  %v35 = vld [vmem:[%s3 + $0x78] sm:$0xff]
  %v36 = vld [vmem:[%s3 + $0x80] sm:$0xff]
  %v37 = vld [vmem:[%s3 + $0x88] sm:$0xff]
  %v38 = vld [vmem:[%s3 + $0x90] sm:$0xff]
  %v39 = vld [vmem:[%s3 + $0x98] sm:$0xff]
  %v40 = vld [vmem:[%s3 + $0xa0] sm:$0xff]
  %v41 = vld [vmem:[%s3 + $0xa8] sm:$0xff]
  %v42 = vld [vmem:[%s3 + $0xb0] sm:$0xff]
  %v43 = vld [vmem:[%s3 + $0xb8] sm:$0xff]
  %v44 = vld [vmem:[%s3 + $0xc0] sm:$0xff]
  %v45 = vld [vmem:[%s3 + $0xc8] sm:$0xff]
  %v46 = vld [vmem:[%s3 + $0xd0] sm:$0xff]
  %v47 = vld [vmem:[%s3 + $0xd8] sm:$0xff]
  %v48 = vld [vmem:[%s3 + $0xe0] sm:$0xff]
  %v49 = vld [vmem:[%s3 + $0xe8] sm:$0xff]
  %v50 = vld [vmem:[%s3 + $0xf0] sm:$0xff]
  %v51 = vld [vmem:[%s3 + $0xf8] sm:$0xff]
  %v52 = vld [vmem:[%s3 + $0x100] sm:$0xff]
  %v53 = vld [vmem:[%s3 + $0x108] sm:$0xff]
  %v54 = vld [vmem:[%s3 + $0x110] sm:$0xff]
  %v55 = vld [vmem:[%s3 + $0x118] sm:$0xff]
  %v56 = vld [vmem:[%s3 + $0x120] sm:$0xff]
  %v57 = vld [vmem:[%s3 + $0x128] sm:$0xff]
  %v58 = vld [vmem:[%s3 + $0x130] sm:$0xff]
  %v59 = vld [vmem:[%s3 + $0x138] sm:$0xff]
  %v60 = vld [vmem:[%s3 + $0x140] sm:$0xff]
  %v61 = vld [vmem:[%s3 + $0x148] sm:$0xff]
  %v62 = vld [vmem:[%s3 + $0x150] sm:$0xff]
  %v63 = vld [vmem:[%s3 + $0x158] sm:$0xff]
  %v64 = vld [vmem:[%s3 + $0x160] sm:$0xff]
  %v65 = vld [vmem:[%s3 + $0x168] sm:$0xff]
  %v66 = vld [vmem:[%s3 + $0x170] sm:$0xff]
  %v67 = vld [vmem:[%s3 + $0x178] sm:$0xff]
  %v68 = vld [vmem:[%s3 + $0x180] sm:$0xff]
  %v69 = vld [vmem:[%s3 + $0x188] sm:$0xff]
  %v70 = vld [vmem:[%s3 + $0x190] sm:$0xff]
  %v71 = vld [vmem:[%s3 + $0x198] sm:$0xff]
  %v72 = vld [vmem:[%s3 + $0x1a0] sm:$0xff]
  %v73 = vld [vmem:[%s3 + $0x1a8] sm:$0xff]
  %v74 = vld [vmem:[%s3 + $0x1b0] sm:$0xff]
  %v75 = vld [vmem:[%s3 + $0x1b8] sm:$0xff]
  %v76 = vld [vmem:[%s3 + $0x1c0] sm:$0xff]
  %v77 = vld [vmem:[%s3 + $0x1c8] sm:$0xff]
  %v78 = vld [vmem:[%s3 + $0x1d0] sm:$0xff]
  %v79 = vld [vmem:[%s3 + $0x1d8] sm:$0xff]
  %v80 = vld [vmem:[%s3 + $0x1e0] sm:$0xff]
  %v81 = vld [vmem:[%s3 + $0x1e8] sm:$0xff]
  %v82 = vld [vmem:[%s3 + $0x1f0] sm:$0xff]
  %v83 = vld [vmem:[%s3 + $0x1f8] sm:$0xff]
  %v84 = vld [vmem:[%s3 + $0x200] sm:$0xff]
  %v85 = vld [vmem:[%s3 + $0x208] sm:$0xff]
  %v86 = vld [vmem:[%s3 + $0x210] sm:$0xff]
  %v87 = vld [vmem:[%s3 + $0x218] sm:$0xff]
  %v88 = vld [vmem:[%s3 + $0x220] sm:$0xff]
  %v89 = vld [vmem:[%s3 + $0x228] sm:$0xff]
  %v90 = vld [vmem:[%s3 + $0x230] sm:$0xff]
  %v91 = vld [vmem:[%s3 + $0x238] sm:$0xff]
  %v92 = vld [vmem:[%s3 + $0x240] sm:$0xff]
  %v93 = vld [vmem:[%s3 + $0x248] sm:$0xff]
  %v94 = vld [vmem:[%s3 + $0x250] sm:$0xff]
  %v95 = vld [vmem:[%s3 + $0x258] sm:$0xff]
  %v96 = vld [vmem:[%s3 + $0x260] sm:$0xff]
  %v97 = vld [vmem:[%s3 + $0x268] sm:$0xff]
  %v98 = vld [vmem:[%s3 + $0x270] sm:$0xff]
  %v99 = vld [vmem:[%s3 + $0x278] sm:$0xff]
  %v100 = vld [vmem:[%s3 + $0x280] sm:$0xff]
  %v101 = vld [vmem:[%s3 + $0x288] sm:$0xff]
  %v102 = vld [vmem:[%s3 + $0x290] sm:$0xff]
  %v103 = vld [vmem:[%s3 + $0x298] sm:$0xff]
  %v104 = vld [vmem:[%s3 + $0x2a0] sm:$0xff]
  %v105 = vld [vmem:[%s3 + $0x2a8] sm:$0xff]
  %v106 = vld [vmem:[%s3 + $0x2b0] sm:$0xff]
  %v107 = vld [vmem:[%s3 + $0x2b8] sm:$0xff]
  %v108 = vld [vmem:[%s3 + $0x2c0] sm:$0xff]
  %v109 = vld [vmem:[%s3 + $0x2c8] sm:$0xff]
  %v110 = vld [vmem:[%s3 + $0x2d0] sm:$0xff]
  %v111 = vld [vmem:[%s3 + $0x2d8] sm:$0xff]
  %v112 = vld [vmem:[%s3 + $0x2e0] sm:$0xff]
  %v113 = vld [vmem:[%s3 + $0x2e8] sm:$0xff]
  %v114 = vld [vmem:[%s3 + $0x2f0] sm:$0xff]
  %v115 = vld [vmem:[%s3 + $0x2f8] sm:$0xff]
  %v116 = vld [vmem:[%s3 + $0x300] sm:$0xff]
  %v117 = vld [vmem:[%s3 + $0x308] sm:$0xff]
  %v118 = vld [vmem:[%s3 + $0x310] sm:$0xff]
  %v119 = vld [vmem:[%s3 + $0x318] sm:$0xff]
  %v120 = vld [vmem:[%s3 + $0x320] sm:$0xff]
  %v121 = vld [vmem:[%s3 + $0x328] sm:$0xff]
  %v122 = vld [vmem:[%s3 + $0x330] sm:$0xff]
  %v123 = vld [vmem:[%s3 + $0x338] sm:$0xff]
  %v124 = vld [vmem:[%s3 + $0x340] sm:$0xff]
  %v125 = vld [vmem:[%s3 + $0x348] sm:$0xff]
  %v126 = vld [vmem:[%s3 + $0x350] sm:$0xff]
  %v127 = vld [vmem:[%s3 + $0x358] sm:$0xff]
  %v128 = vld [vmem:[%s3 + $0x360] sm:$0xff]
  %v129 = vld [vmem:[%s3 + $0x368] sm:$0xff]
  %v130 = vld [vmem:[%s3 + $0x370] sm:$0xff]
  %v131 = vld [vmem:[%s3 + $0x378] sm:$0xff]
  %v132 = vld [vmem:[%s3 + $0x380] sm:$0xff]
  %v133 = vld [vmem:[%s3 + $0x388] sm:$0xff]
  %v134 = vld [vmem:[%s3 + $0x390] sm:$0xff]
  %v135 = vld [vmem:[%s3 + $0x398] sm:$0xff]
  %v136 = vld [vmem:[%s3 + $0x3a0] sm:$0xff]
  %v137 = vld [vmem:[%s3 + $0x3a8] sm:$0xff]
  %v138 = vld [vmem:[%s3 + $0x3b0] sm:$0xff]
  %v139 = vld [vmem:[%s3 + $0x3b8] sm:$0xff]
  %v140 = vld [vmem:[%s3 + $0x3c0] sm:$0xff]
  %v141 = vld [vmem:[%s3 + $0x3c8] sm:$0xff]
  %v142 = vld [vmem:[%s3 + $0x3d0] sm:$0xff]
  %v143 = vld [vmem:[%s3 + $0x3d8] sm:$0xff]
  %v144 = vld [vmem:[%s3 + $0x3e0] sm:$0xff]
  %v145 = vld [vmem:[%s3 + $0x3e8] sm:$0xff]
  %v146 = vld [vmem:[%s3 + $0x3f0] sm:$0xff]
  %v147 = vld [vmem:[%s3 + $0x3f8] sm:$0xff]
  %v148 = vld [vmem:[%s3 + $0x400] sm:$0xff]
  %v149 = vld [vmem:[%s3 + $0x408] sm:$0xff]
  %v150 = vld [vmem:[%s3 + $0x410] sm:$0xff]
  %v151 = vld [vmem:[%s3 + $0x418] sm:$0xff]
  %v152 = vld [vmem:[%s3 + $0x420] sm:$0x1]
  %v153 = vld [vmem:[%s3 + $0x428] sm:$0x1]
  %v154 = vld [vmem:[%s3 + $0x430] sm:$0x1]
  %v155 = vld [vmem:[%s3 + $0x438] sm:$0x1]
  %v156 = vld [vmem:[%s3 + $0x440] sm:$0x3]
  %v157 = vld [vmem:[%s3 + $0x448] sm:$0x3]
  %v158 = vld [vmem:[%s3 + $0x450] sm:$0x3]
  %v159 = vld [vmem:[%s3 + $0x458] sm:$0x3]
  %v160 = vld [vmem:[%s4] sm:$0xff]
  %v161 = vld [vmem:[%s0] sm:$0xff]
  %v162 = vld [vmem:[%s0 + $0x8] sm:$0xff]
  %vm163 = vcmask 130048
  %v165 = vsel %vm163, %v160, 0
  %167 = vmatprep.subr.mxu0 0.0
  %168 = vmatpush1.msra.mxu0 0.0
  %169 = vmatprep.subr.mxu0 0.0
  %170 = vmatpush1.msra.mxu0 0.0
  %171 = vmatprep.subr.mxu0 0.0
  %172 = vmatpush1.msra.mxu0 0.0
  %173 = vmatprep.subr.mxu0 0.0
  %174 = vmatpush1.msra.mxu0 0.0
  %175 = vmatprep.subr.mxu0 0.0
  %176 = vmatpush1.msra.mxu0 0.0
  %177 = vmatprep.subr.mxu0 0.0
  %178 = vmatpush1.msra.mxu0 0.0
  %179 = vmatprep.subr.mxu0 0.0
  %180 = vmatpush1.msra.mxu0 0.0
  %181 = vmatprep.subr.mxu0 0.0
  %182 = vmatpush1.msra.mxu0 0.0
  %183 = vmatprep.subr.mxu0 0.0
  %184 = vmatpush1.msra.mxu0 0.0
  %185 = vmatprep.subr.mxu0 0.0
  %186 = vmatpush1.msra.mxu0 0.0
  %187 = vmatprep.subr.mxu0 0.0
  %188 = vmatpush1.msra.mxu0 0.0
  %189 = vmatprep.subr.mxu0 0.0
  %190 = vmatpush1.msra.mxu0 0.0
  %191 = vmatprep.subr.mxu0 0.0
  %192 = vmatpush1.msra.mxu0 0.0
  %193 = vmatprep.subr.mxu0 0.0
  %194 = vmatpush1.msra.mxu0 0.0
  %195 = vmatprep.subr.mxu0 0.0
  %196 = vmatpush1.msra.mxu0 %v162
  %197 = vmatprep.subr.mxu0 0.0
  %198 = vmatpush1.msra.mxu0 %v161
  %199 = vmatprep.subr.mxu0 0.0
  %200 = vmatpush2.msra.mxu0 0.0
  %201 = vmatprep.subr.mxu0 0.0
  %202 = vmatpush2.msra.mxu0 0.0
  %203 = vmatprep.subr.mxu0 0.0
  %204 = vmatpush2.msra.mxu0 0.0
  %205 = vmatprep.subr.mxu0 0.0
  %206 = vmatpush2.msra.mxu0 0.0
  %207 = vmatprep.subr.mxu0 0.0
  %208 = vmatpush2.msra.mxu0 0.0
  %209 = vmatprep.subr.mxu0 0.0
  %210 = vmatpush2.msra.mxu0 0.0
  %211 = vmatprep.subr.mxu0 0.0
  %212 = vmatpush2.msra.mxu0 0.0
  %213 = vmatprep.subr.mxu0 0.0
  %214 = vmatpush2.msra.mxu0 0.0
  %215 = vmatprep.subr.mxu0 0.0
  %216 = vmatpush2.msra.mxu0 0.0
  %217 = vmatprep.subr.mxu0 0.0
  %218 = vmatpush2.msra.mxu0 0.0
  %219 = vmatprep.subr.mxu0 0.0
  %220 = vmatpush2.msra.mxu0 0.0
  %221 = vmatprep.subr.mxu0 0.0
  %222 = vmatpush2.msra.mxu0 0.0
  %223 = vmatprep.subr.mxu0 0.0
  %224 = vmatpush2.msra.mxu0 0.0
  %225 = vmatprep.subr.mxu0 0.0
  %226 = vmatpush2.msra.mxu0 0.0
  %227 = vmatprep.subr.mxu0 0.0
  %228 = vmatpush2.msra.mxu0 0.0
  %229 = vmatprep.subr.mxu0 0.0
  %230 = vmatpush2.msra.mxu0 0.0
  %231 = vmatprep.mubr.f32.mxu0 0.0
  %232 = vmatmul.mubr.f32.gmra.mxu0 %v165
  %v233 = vpop.f32.mrf.mxu0
  %v234 = vadd.f32 0.0, %v233
  %v235 = vpop.f32.mrf.mxu0
  %236 = vdwg.mxu0
  %237 = vset.pattern.permute.xlu0 72
  %238 = vperm.xlu0 %237, %v160
  %v239 = vpop.permute.xlu0 %238
  %241 = vmatprep.subr.mxu0 %v81
  %242 = vmatpush1.msra.mxu0 %v80
  %243 = vmatprep.subr.mxu0 %v77
  %244 = vmatpush1.msra.mxu0 %v76
  %245 = vmatprep.subr.mxu0 %v73
  %246 = vmatpush1.msra.mxu0 %v72
  %247 = vmatprep.subr.mxu0 %v69
  %248 = vmatpush1.msra.mxu0 %v68
  %249 = vmatprep.subr.mxu0 %v65
  %250 = vmatpush1.msra.mxu0 %v64
  %251 = vmatprep.subr.mxu0 %v61
  %252 = vmatpush1.msra.mxu0 %v60
  %253 = vmatprep.subr.mxu0 %v57
  %254 = vmatpush1.msra.mxu0 %v56
  %255 = vmatprep.subr.mxu0 %v53
  %256 = vmatpush1.msra.mxu0 %v52
  %257 = vmatprep.subr.mxu0 %v49
  %258 = vmatpush1.msra.mxu0 %v48
  %259 = vmatprep.subr.mxu0 %v45
  %260 = vmatpush1.msra.mxu0 %v44
  %261 = vmatprep.subr.mxu0 %v41
  %262 = vmatpush1.msra.mxu0 %v40
  %263 = vmatprep.subr.mxu0 %v37
  %264 = vmatpush1.msra.mxu0 %v36
  %265 = vmatprep.subr.mxu0 %v33
  %266 = vmatpush1.msra.mxu0 %v32
  %267 = vmatprep.subr.mxu0 %v29
  %268 = vmatpush1.msra.mxu0 %v28
  %269 = vmatprep.subr.mxu0 %v25
  %270 = vmatpush1.msra.mxu0 %v24
  %271 = vmatprep.subr.mxu0 %v21
  %272 = vmatpush1.msra.mxu0 %v20
  %273 = vmatprep.subr.mxu0 0.0
  %274 = vmatpush2.msra.mxu0 0.0
  %275 = vmatprep.subr.mxu0 0.0
  %276 = vmatpush2.msra.mxu0 0.0
  %277 = vmatprep.subr.mxu0 0.0
  %278 = vmatpush2.msra.mxu0 0.0
  %279 = vmatprep.subr.mxu0 0.0
  %280 = vmatpush2.msra.mxu0 0.0
  %281 = vmatprep.subr.mxu0 0.0
  %282 = vmatpush2.msra.mxu0 0.0
  %283 = vmatprep.subr.mxu0 0.0
  %284 = vmatpush2.msra.mxu0 0.0
  %285 = vmatprep.subr.mxu0 0.0
  %286 = vmatpush2.msra.mxu0 0.0
  %287 = vmatprep.subr.mxu0 0.0
  %288 = vmatpush2.msra.mxu0 0.0
  %289 = vmatprep.subr.mxu0 0.0
  %290 = vmatpush2.msra.mxu0 0.0
  %291 = vmatprep.subr.mxu0 0.0
  %292 = vmatpush2.msra.mxu0 0.0
  %293 = vmatprep.subr.mxu0 0.0
  %294 = vmatpush2.msra.mxu0 0.0
  %295 = vmatprep.subr.mxu0 0.0
  %296 = vmatpush2.msra.mxu0 0.0
  %297 = vmatprep.subr.mxu0 0.0
  %298 = vmatpush2.msra.mxu0 0.0
  %299 = vmatprep.subr.mxu0 0.0
  %300 = vmatpush2.msra.mxu0 0.0
  %301 = vmatprep.subr.mxu0 0.0
  %302 = vmatpush2.msra.mxu0 0.0
  %303 = vmatprep.subr.mxu0 0.0
  %304 = vmatpush2.msra.mxu0 0.0
  %305 = vmatprep.mubr.f32.mxu0 0.0
  %306 = vmatmul.mubr.f32.gmra.mxu0 %v234
  %v307 = vpop.f32.mrf.mxu0
  %v308 = vadd.f32 %v239, %v307
  %v309 = vpop.f32.mrf.mxu0
  %v310 = vadd.f32 %v239, %v309
  %311 = vdwg.mxu0
  %312 = vmatprep.subr.mxu0 %v83
  %313 = vmatpush1.msra.mxu0 %v82
  %314 = vmatprep.subr.mxu0 %v79
  %315 = vmatpush1.msra.mxu0 %v78
  %316 = vmatprep.subr.mxu0 %v75
  %317 = vmatpush1.msra.mxu0 %v74
  %318 = vmatprep.subr.mxu0 %v71
  %319 = vmatpush1.msra.mxu0 %v70
  %320 = vmatprep.subr.mxu0 %v67
  %321 = vmatpush1.msra.mxu0 %v66
  %322 = vmatprep.subr.mxu0 %v63
  %323 = vmatpush1.msra.mxu0 %v62
  %324 = vmatprep.subr.mxu0 %v59
  %325 = vmatpush1.msra.mxu0 %v58
  %326 = vmatprep.subr.mxu0 %v55
  %327 = vmatpush1.msra.mxu0 %v54
  %328 = vmatprep.subr.mxu0 %v51
  %329 = vmatpush1.msra.mxu0 %v50
  %330 = vmatprep.subr.mxu0 %v47
  %331 = vmatpush1.msra.mxu0 %v46
  %332 = vmatprep.subr.mxu0 %v43
  %333 = vmatpush1.msra.mxu0 %v42
  %334 = vmatprep.subr.mxu0 %v39
  %335 = vmatpush1.msra.mxu0 %v38
  %336 = vmatprep.subr.mxu0 %v35
  %337 = vmatpush1.msra.mxu0 %v34
  %338 = vmatprep.subr.mxu0 %v31
  %339 = vmatpush1.msra.mxu0 %v30
  %340 = vmatprep.subr.mxu0 %v27
  %341 = vmatpush1.msra.mxu0 %v26
  %342 = vmatprep.subr.mxu0 %v23
  %343 = vmatpush1.msra.mxu0 %v22
  %344 = vmatprep.subr.mxu0 0.0
  %345 = vmatpush2.msra.mxu0 0.0
  %346 = vmatprep.subr.mxu0 0.0
  %347 = vmatpush2.msra.mxu0 0.0
  %348 = vmatprep.subr.mxu0 0.0
  %349 = vmatpush2.msra.mxu0 0.0
  %350 = vmatprep.subr.mxu0 0.0
  %351 = vmatpush2.msra.mxu0 0.0
  %352 = vmatprep.subr.mxu0 0.0
  %353 = vmatpush2.msra.mxu0 0.0
  %354 = vmatprep.subr.mxu0 0.0
  %355 = vmatpush2.msra.mxu0 0.0
  %356 = vmatprep.subr.mxu0 0.0
  %357 = vmatpush2.msra.mxu0 0.0
  %358 = vmatprep.subr.mxu0 0.0
  %359 = vmatpush2.msra.mxu0 0.0
  %360 = vmatprep.subr.mxu0 0.0
  %361 = vmatpush2.msra.mxu0 0.0
  %362 = vmatprep.subr.mxu0 0.0
  %363 = vmatpush2.msra.mxu0 0.0
  %364 = vmatprep.subr.mxu0 0.0
  %365 = vmatpush2.msra.mxu0 0.0
  %366 = vmatprep.subr.mxu0 0.0
  %367 = vmatpush2.msra.mxu0 0.0
  %368 = vmatprep.subr.mxu0 0.0
  %369 = vmatpush2.msra.mxu0 0.0
  %370 = vmatprep.subr.mxu0 0.0
  %371 = vmatpush2.msra.mxu0 0.0
  %372 = vmatprep.subr.mxu0 0.0
  %373 = vmatpush2.msra.mxu0 0.0
  %374 = vmatprep.subr.mxu0 0.0
  %375 = vmatpush2.msra.mxu0 0.0
  %376 = vmatprep.mubr.f32.mxu0 0.0
  %377 = vmatmul.mubr.f32.gmra.mxu0 %v234
  %v378 = vpop.f32.mrf.mxu0
  %v379 = vadd.f32 %v239, %v378
  %v380 = vpop.f32.mrf.mxu0
  %v381 = vadd.f32 %v239, %v380
  %382 = vdwg.mxu0
  %v383 = vmul.f32 %v308, 0.01
  %v384 = vmul.f32 %v310, 0.01
  %v385 = vmul.f32 %v379, 0.01
  %v386 = vmul.f32 %v381, 0.01
  %v387 = vmax.f32 %v308, %v383
  %v388 = vmax.f32 %v310, %v384
  %v389 = vmax.f32 %v379, %v385
  %v390 = vmax.f32 %v381, %v386
  %v391 = vld [vmem:[%s1] sm:$0xff]
  %v392 = vld [vmem:[%s1 + $0x8] sm:$0xff]
  %v393 = vld [vmem:[%s1 + $0x10] sm:$0xff]
  %v394 = vld [vmem:[%s1 + $0x18] sm:$0xff]
  %v395 = vld [vmem:[%s4 + $0x8] sm:$0xf]
  %v396 = vld [vmem:[%s4 + $0x10] sm:$0xf]
  %v397 = vld [vmem:[%s4 + $0x18] sm:$0xff]
  %vm398 = vcmask 64512
  %v400 = vsel %vm398, %v396, 0
  %402 = vmatprep.subr.mxu0 0.0
  %403 = vmatpush1.msra.mxu0 0.0
  %404 = vmatprep.subr.mxu0 0.0
  %405 = vmatpush1.msra.mxu0 0.0
  %406 = vmatprep.subr.mxu0 0.0
  %407 = vmatpush1.msra.mxu0 0.0
  %408 = vmatprep.subr.mxu0 0.0
  %409 = vmatpush1.msra.mxu0 0.0
  %410 = vmatprep.subr.mxu0 0.0
  %411 = vmatpush1.msra.mxu0 0.0
  %412 = vmatprep.subr.mxu0 0.0
  %413 = vmatpush1.msra.mxu0 0.0
  %414 = vmatprep.subr.mxu0 0.0
  %415 = vmatpush1.msra.mxu0 0.0
  %416 = vmatprep.subr.mxu0 0.0
  %417 = vmatpush1.msra.mxu0 0.0
  %418 = vmatprep.subr.mxu0 0.0
  %419 = vmatpush1.msra.mxu0 0.0
  %420 = vmatprep.subr.mxu0 0.0
  %421 = vmatpush1.msra.mxu0 0.0
  %422 = vmatprep.subr.mxu0 0.0
  %423 = vmatpush1.msra.mxu0 0.0
  %424 = vmatprep.subr.mxu0 0.0
  %425 = vmatpush1.msra.mxu0 0.0
  %426 = vmatprep.subr.mxu0 0.0
  %427 = vmatpush1.msra.mxu0 0.0
  %428 = vmatprep.subr.mxu0 0.0
  %429 = vmatpush1.msra.mxu0 0.0
  %430 = vmatprep.subr.mxu0 0.0
  %431 = vmatpush1.msra.mxu0 0.0
  %432 = vmatprep.subr.mxu0 %v392
  %433 = vmatpush1.msra.mxu0 %v391
  %434 = vmatprep.subr.mxu0 0.0
  %435 = vmatpush2.msra.mxu0 0.0
  %436 = vmatprep.subr.mxu0 0.0
  %437 = vmatpush2.msra.mxu0 0.0
  %438 = vmatprep.subr.mxu0 0.0
  %439 = vmatpush2.msra.mxu0 0.0
  %440 = vmatprep.subr.mxu0 0.0
  %441 = vmatpush2.msra.mxu0 0.0
  %442 = vmatprep.subr.mxu0 0.0
  %443 = vmatpush2.msra.mxu0 0.0
  %444 = vmatprep.subr.mxu0 0.0
  %445 = vmatpush2.msra.mxu0 0.0
  %446 = vmatprep.subr.mxu0 0.0
  %447 = vmatpush2.msra.mxu0 0.0
  %448 = vmatprep.subr.mxu0 0.0
  %449 = vmatpush2.msra.mxu0 0.0
  %450 = vmatprep.subr.mxu0 0.0
  %451 = vmatpush2.msra.mxu0 0.0
  %452 = vmatprep.subr.mxu0 0.0
  %453 = vmatpush2.msra.mxu0 0.0
  %454 = vmatprep.subr.mxu0 0.0
  %455 = vmatpush2.msra.mxu0 0.0
  %456 = vmatprep.subr.mxu0 0.0
  %457 = vmatpush2.msra.mxu0 0.0
  %458 = vmatprep.subr.mxu0 0.0
  %459 = vmatpush2.msra.mxu0 0.0
  %460 = vmatprep.subr.mxu0 0.0
  %461 = vmatpush2.msra.mxu0 0.0
  %462 = vmatprep.subr.mxu0 0.0
  %463 = vmatpush2.msra.mxu0 0.0
  %464 = vmatprep.subr.mxu0 0.0
  %465 = vmatpush2.msra.mxu0 0.0
  %466 = vmatprep.mubr.f32.mxu0 0.0
  %467 = vmatmul.mubr.f32.gmra.mxu0 %v400
  %v468 = vpop.f32.mrf.mxu0
  %v469 = vadd.f32 0.0, %v468
  %v470 = vpop.f32.mrf.mxu0
  %v471 = vadd.f32 0.0, %v470
  %472 = vdwg.mxu0
  %473 = vmatprep.subr.mxu0 0.0
  %474 = vmatpush1.msra.mxu0 0.0
  %475 = vmatprep.subr.mxu0 0.0
  %476 = vmatpush1.msra.mxu0 0.0
  %477 = vmatprep.subr.mxu0 0.0
  %478 = vmatpush1.msra.mxu0 0.0
  %479 = vmatprep.subr.mxu0 0.0
  %480 = vmatpush1.msra.mxu0 0.0
  %481 = vmatprep.subr.mxu0 0.0
  %482 = vmatpush1.msra.mxu0 0.0
  %483 = vmatprep.subr.mxu0 0.0
  %484 = vmatpush1.msra.mxu0 0.0
  %485 = vmatprep.subr.mxu0 0.0
  %486 = vmatpush1.msra.mxu0 0.0
  %487 = vmatprep.subr.mxu0 0.0
  %488 = vmatpush1.msra.mxu0 0.0
  %489 = vmatprep.subr.mxu0 0.0
  %490 = vmatpush1.msra.mxu0 0.0
  %491 = vmatprep.subr.mxu0 0.0
  %492 = vmatpush1.msra.mxu0 0.0
  %493 = vmatprep.subr.mxu0 0.0
  %494 = vmatpush1.msra.mxu0 0.0
  %495 = vmatprep.subr.mxu0 0.0
  %496 = vmatpush1.msra.mxu0 0.0
  %497 = vmatprep.subr.mxu0 0.0
  %498 = vmatpush1.msra.mxu0 0.0
  %499 = vmatprep.subr.mxu0 0.0
  %500 = vmatpush1.msra.mxu0 0.0
  %501 = vmatprep.subr.mxu0 0.0
  %502 = vmatpush1.msra.mxu0 0.0
  %503 = vmatprep.subr.mxu0 %v394
  %504 = vmatpush1.msra.mxu0 %v393
  %505 = vmatprep.subr.mxu0 0.0
  %506 = vmatpush2.msra.mxu0 0.0
  %507 = vmatprep.subr.mxu0 0.0
  %508 = vmatpush2.msra.mxu0 0.0
  %509 = vmatprep.subr.mxu0 0.0
  %510 = vmatpush2.msra.mxu0 0.0
  %511 = vmatprep.subr.mxu0 0.0
  %512 = vmatpush2.msra.mxu0 0.0
  %513 = vmatprep.subr.mxu0 0.0
  %514 = vmatpush2.msra.mxu0 0.0
  %515 = vmatprep.subr.mxu0 0.0
  %516 = vmatpush2.msra.mxu0 0.0
  %517 = vmatprep.subr.mxu0 0.0
  %518 = vmatpush2.msra.mxu0 0.0
  %519 = vmatprep.subr.mxu0 0.0
  %520 = vmatpush2.msra.mxu0 0.0
  %521 = vmatprep.subr.mxu0 0.0
  %522 = vmatpush2.msra.mxu0 0.0
  %523 = vmatprep.subr.mxu0 0.0
  %524 = vmatpush2.msra.mxu0 0.0
  %525 = vmatprep.subr.mxu0 0.0
  %526 = vmatpush2.msra.mxu0 0.0
  %527 = vmatprep.subr.mxu0 0.0
  %528 = vmatpush2.msra.mxu0 0.0
  %529 = vmatprep.subr.mxu0 0.0
  %530 = vmatpush2.msra.mxu0 0.0
  %531 = vmatprep.subr.mxu0 0.0
  %532 = vmatpush2.msra.mxu0 0.0
  %533 = vmatprep.subr.mxu0 0.0
  %534 = vmatpush2.msra.mxu0 0.0
  %535 = vmatprep.subr.mxu0 0.0
  %536 = vmatpush2.msra.mxu0 0.0
  %537 = vmatprep.mubr.f32.mxu0 0.0
  %538 = vmatmul.mubr.f32.gmra.mxu0 %v400
  %v539 = vpop.f32.mrf.mxu0
  %v540 = vadd.f32 0.0, %v539
  %v541 = vpop.f32.mrf.mxu0
  %v542 = vadd.f32 0.0, %v541
  %543 = vdwg.mxu0
  %v545 = vsel %vm398, %v395, 0
  %547 = vmatprep.subr.mxu0 0.0
  %548 = vmatpush1.msra.mxu0 0.0
  %549 = vmatprep.subr.mxu0 0.0
  %550 = vmatpush1.msra.mxu0 0.0
  %551 = vmatprep.subr.mxu0 0.0
  %552 = vmatpush1.msra.mxu0 0.0
  %553 = vmatprep.subr.mxu0 0.0
  %554 = vmatpush1.msra.mxu0 0.0
  %555 = vmatprep.subr.mxu0 0.0
  %556 = vmatpush1.msra.mxu0 0.0
  %557 = vmatprep.subr.mxu0 0.0
  %558 = vmatpush1.msra.mxu0 0.0
  %559 = vmatprep.subr.mxu0 0.0
  %560 = vmatpush1.msra.mxu0 0.0
  %561 = vmatprep.subr.mxu0 0.0
  %562 = vmatpush1.msra.mxu0 0.0
  %563 = vmatprep.subr.mxu0 0.0
  %564 = vmatpush1.msra.mxu0 0.0
  %565 = vmatprep.subr.mxu0 0.0
  %566 = vmatpush1.msra.mxu0 0.0
  %567 = vmatprep.subr.mxu0 0.0
  %568 = vmatpush1.msra.mxu0 0.0
  %569 = vmatprep.subr.mxu0 0.0
  %570 = vmatpush1.msra.mxu0 0.0
  %571 = vmatprep.subr.mxu0 0.0
  %572 = vmatpush1.msra.mxu0 0.0
  %573 = vmatprep.subr.mxu0 0.0
  %574 = vmatpush1.msra.mxu0 0.0
  %575 = vmatprep.subr.mxu0 0.0
  %576 = vmatpush1.msra.mxu0 0.0
  %577 = vmatprep.subr.mxu0 %v388
  %578 = vmatpush1.msra.mxu0 %v387
  %579 = vmatprep.subr.mxu0 0.0
  %580 = vmatpush2.msra.mxu0 0.0
  %581 = vmatprep.subr.mxu0 0.0
  %582 = vmatpush2.msra.mxu0 0.0
  %583 = vmatprep.subr.mxu0 0.0
  %584 = vmatpush2.msra.mxu0 0.0
  %585 = vmatprep.subr.mxu0 0.0
  %586 = vmatpush2.msra.mxu0 0.0
  %587 = vmatprep.subr.mxu0 0.0
  %588 = vmatpush2.msra.mxu0 0.0
  %589 = vmatprep.subr.mxu0 0.0
  %590 = vmatpush2.msra.mxu0 0.0
  %591 = vmatprep.subr.mxu0 0.0
  %592 = vmatpush2.msra.mxu0 0.0
  %593 = vmatprep.subr.mxu0 0.0
  %594 = vmatpush2.msra.mxu0 0.0
  %595 = vmatprep.subr.mxu0 0.0
  %596 = vmatpush2.msra.mxu0 0.0
  %597 = vmatprep.subr.mxu0 0.0
  %598 = vmatpush2.msra.mxu0 0.0
  %599 = vmatprep.subr.mxu0 0.0
  %600 = vmatpush2.msra.mxu0 0.0
  %601 = vmatprep.subr.mxu0 0.0
  %602 = vmatpush2.msra.mxu0 0.0
  %603 = vmatprep.subr.mxu0 0.0
  %604 = vmatpush2.msra.mxu0 0.0
  %605 = vmatprep.subr.mxu0 0.0
  %606 = vmatpush2.msra.mxu0 0.0
  %607 = vmatprep.subr.mxu0 0.0
  %608 = vmatpush2.msra.mxu0 0.0
  %609 = vmatprep.subr.mxu0 0.0
  %610 = vmatpush2.msra.mxu0 0.0
  %611 = vmatprep.mubr.f32.mxu0 0.0
  %612 = vmatmul.mubr.f32.gmra.mxu0 %v545
  %v613 = vpop.f32.mrf.mxu0
  %v614 = vadd.f32 %v469, %v613
  %v615 = vpop.f32.mrf.mxu0
  %v616 = vadd.f32 %v471, %v615
  %617 = vdwg.mxu0
  %618 = vmatprep.subr.mxu0 0.0
  %619 = vmatpush1.msra.mxu0 0.0
  %620 = vmatprep.subr.mxu0 0.0
  %621 = vmatpush1.msra.mxu0 0.0
  %622 = vmatprep.subr.mxu0 0.0
  %623 = vmatpush1.msra.mxu0 0.0
  %624 = vmatprep.subr.mxu0 0.0
  %625 = vmatpush1.msra.mxu0 0.0
  %626 = vmatprep.subr.mxu0 0.0
  %627 = vmatpush1.msra.mxu0 0.0
  %628 = vmatprep.subr.mxu0 0.0
  %629 = vmatpush1.msra.mxu0 0.0
  %630 = vmatprep.subr.mxu0 0.0
  %631 = vmatpush1.msra.mxu0 0.0
  %632 = vmatprep.subr.mxu0 0.0
  %633 = vmatpush1.msra.mxu0 0.0
  %634 = vmatprep.subr.mxu0 0.0
  %635 = vmatpush1.msra.mxu0 0.0
  %636 = vmatprep.subr.mxu0 0.0
  %637 = vmatpush1.msra.mxu0 0.0
  %638 = vmatprep.subr.mxu0 0.0
  %639 = vmatpush1.msra.mxu0 0.0
  %640 = vmatprep.subr.mxu0 0.0
  %641 = vmatpush1.msra.mxu0 0.0
  %642 = vmatprep.subr.mxu0 0.0
  %643 = vmatpush1.msra.mxu0 0.0
  %644 = vmatprep.subr.mxu0 0.0
  %645 = vmatpush1.msra.mxu0 0.0
  %646 = vmatprep.subr.mxu0 0.0
  %647 = vmatpush1.msra.mxu0 0.0
  %648 = vmatprep.subr.mxu0 %v390
  %649 = vmatpush1.msra.mxu0 %v389
  %650 = vmatprep.subr.mxu0 0.0
  %651 = vmatpush2.msra.mxu0 0.0
  %652 = vmatprep.subr.mxu0 0.0
  %653 = vmatpush2.msra.mxu0 0.0
  %654 = vmatprep.subr.mxu0 0.0
  %655 = vmatpush2.msra.mxu0 0.0
  %656 = vmatprep.subr.mxu0 0.0
  %657 = vmatpush2.msra.mxu0 0.0
  %658 = vmatprep.subr.mxu0 0.0
  %659 = vmatpush2.msra.mxu0 0.0
  %660 = vmatprep.subr.mxu0 0.0
  %661 = vmatpush2.msra.mxu0 0.0
  %662 = vmatprep.subr.mxu0 0.0
  %663 = vmatpush2.msra.mxu0 0.0
  %664 = vmatprep.subr.mxu0 0.0
  %665 = vmatpush2.msra.mxu0 0.0
  %666 = vmatprep.subr.mxu0 0.0
  %667 = vmatpush2.msra.mxu0 0.0
  %668 = vmatprep.subr.mxu0 0.0
  %669 = vmatpush2.msra.mxu0 0.0
  %670 = vmatprep.subr.mxu0 0.0
  %671 = vmatpush2.msra.mxu0 0.0
  %672 = vmatprep.subr.mxu0 0.0
  %673 = vmatpush2.msra.mxu0 0.0
  %674 = vmatprep.subr.mxu0 0.0
  %675 = vmatpush2.msra.mxu0 0.0
  %676 = vmatprep.subr.mxu0 0.0
  %677 = vmatpush2.msra.mxu0 0.0
  %678 = vmatprep.subr.mxu0 0.0
  %679 = vmatpush2.msra.mxu0 0.0
  %680 = vmatprep.subr.mxu0 0.0
  %681 = vmatpush2.msra.mxu0 0.0
  %682 = vmatprep.mubr.f32.mxu0 0.0
  %683 = vmatmul.mubr.f32.gmra.mxu0 %v545
  %v684 = vpop.f32.mrf.mxu0
  %v685 = vadd.f32 %v540, %v684
  %v686 = vpop.f32.mrf.mxu0
  %v687 = vadd.f32 %v542, %v686
  %688 = vdwg.mxu0
  %689 = vset.pattern.permute.xlu0 72
  %690 = vperm.xlu0 %689, %v395
  %v691 = vpop.permute.xlu0 %690
  %v693 = vadd.f32 %v614, %v691
  %v694 = vadd.f32 %v616, %v691
  %v695 = vadd.f32 %v685, %v691
  %v696 = vadd.f32 %v687, %v691
  %v697 = vmul.f32 %v693, 0.01
  %v698 = vmul.f32 %v694, 0.01
  %v699 = vmul.f32 %v695, 0.01
  %v700 = vmul.f32 %v696, 0.01
  %v701 = vmax.f32 %v693, %v697
  %v702 = vmax.f32 %v694, %v698
  %v703 = vmax.f32 %v695, %v699
  %v704 = vmax.f32 %v696, %v700
  %706 = vset.pattern.permute.xlu0 72
  %707 = vperm.xlu0 %706, %v397
  %v708 = vpop.permute.xlu0 %707
  %vm710 = vcmask 31744
  %v711 = vsel %vm710, %v397, 0
  %vm713 = vcmask 1043456
  %v715 = vsel %vm713, %v701, 0
  %v718 = vsel %vm713, %v702, 0
  %v721 = vsel %vm713, %v703, 0
  %v724 = vsel %vm713, %v704, 0
  %726 = vmatprep.subr.mxu0 0.0
  %727 = vmatpush1.msra.mxu0 0.0
  %728 = vmatprep.subr.mxu0 0.0
  %729 = vmatpush1.msra.mxu0 0.0
  %730 = vmatprep.subr.mxu0 0.0
  %731 = vmatpush1.msra.mxu0 0.0
  %732 = vmatprep.subr.mxu0 0.0
  %733 = vmatpush1.msra.mxu0 0.0
  %734 = vmatprep.subr.mxu0 0.0
  %735 = vmatpush1.msra.mxu0 0.0
  %736 = vmatprep.subr.mxu0 0.0
  %737 = vmatpush1.msra.mxu0 0.0
  %738 = vmatprep.subr.mxu0 0.0
  %739 = vmatpush1.msra.mxu0 0.0
  %740 = vmatprep.subr.mxu0 0.0
  %741 = vmatpush1.msra.mxu0 0.0
  %742 = vmatprep.subr.mxu0 0.0
  %743 = vmatpush1.msra.mxu0 0.0
  %744 = vmatprep.subr.mxu0 0.0
  %745 = vmatpush1.msra.mxu0 0.0
  %746 = vmatprep.subr.mxu0 0.0
  %747 = vmatpush1.msra.mxu0 0.0
  %748 = vmatprep.subr.mxu0 0.0
  %749 = vmatpush1.msra.mxu0 0.0
  %750 = vmatprep.subr.mxu0 0.0
  %751 = vmatpush1.msra.mxu0 0.0
  %752 = vmatprep.subr.mxu0 0.0
  %753 = vmatpush1.msra.mxu0 0.0
  %754 = vmatprep.subr.mxu0 0.0
  %755 = vmatpush1.msra.mxu0 0.0
  %756 = vmatprep.subr.mxu0 %v718
  %757 = vmatpush1.msra.mxu0 %v715
  %758 = vmatprep.subr.mxu0 0.0
  %759 = vmatpush2.msra.mxu0 0.0
  %760 = vmatprep.subr.mxu0 0.0
  %761 = vmatpush2.msra.mxu0 0.0
  %762 = vmatprep.subr.mxu0 0.0
  %763 = vmatpush2.msra.mxu0 0.0
  %764 = vmatprep.subr.mxu0 0.0
  %765 = vmatpush2.msra.mxu0 0.0
  %766 = vmatprep.subr.mxu0 0.0
  %767 = vmatpush2.msra.mxu0 0.0
  %768 = vmatprep.subr.mxu0 0.0
  %769 = vmatpush2.msra.mxu0 0.0
  %770 = vmatprep.subr.mxu0 0.0
  %771 = vmatpush2.msra.mxu0 0.0
  %772 = vmatprep.subr.mxu0 0.0
  %773 = vmatpush2.msra.mxu0 0.0
  %774 = vmatprep.subr.mxu0 0.0
  %775 = vmatpush2.msra.mxu0 0.0
  %776 = vmatprep.subr.mxu0 0.0
  %777 = vmatpush2.msra.mxu0 0.0
  %778 = vmatprep.subr.mxu0 0.0
  %779 = vmatpush2.msra.mxu0 0.0
  %780 = vmatprep.subr.mxu0 0.0
  %781 = vmatpush2.msra.mxu0 0.0
  %782 = vmatprep.subr.mxu0 0.0
  %783 = vmatpush2.msra.mxu0 0.0
  %784 = vmatprep.subr.mxu0 0.0
  %785 = vmatpush2.msra.mxu0 0.0
  %786 = vmatprep.subr.mxu0 0.0
  %787 = vmatpush2.msra.mxu0 0.0
  %788 = vmatprep.subr.mxu0 0.0
  %789 = vmatpush2.msra.mxu0 0.0
  %790 = vmatprep.mubr.f32.mxu0 0.0
  %791 = vmatmul.mubr.f32.gmra.mxu0 %v711
  %v792 = vpop.f32.mrf.mxu0
  %v793 = vadd.f32 %v708, %v792
  %v794 = vpop.f32.mrf.mxu0
  %v795 = vadd.f32 %v708, %v794
  %796 = vdwg.mxu0
  %797 = vmatprep.subr.mxu0 0.0
  %798 = vmatpush1.msra.mxu0 0.0
  %799 = vmatprep.subr.mxu0 0.0
  %800 = vmatpush1.msra.mxu0 0.0
  %801 = vmatprep.subr.mxu0 0.0
  %802 = vmatpush1.msra.mxu0 0.0
  %803 = vmatprep.subr.mxu0 0.0
  %804 = vmatpush1.msra.mxu0 0.0
  %805 = vmatprep.subr.mxu0 0.0
  %806 = vmatpush1.msra.mxu0 0.0
  %807 = vmatprep.subr.mxu0 0.0
  %808 = vmatpush1.msra.mxu0 0.0
  %809 = vmatprep.subr.mxu0 0.0
  %810 = vmatpush1.msra.mxu0 0.0
  %811 = vmatprep.subr.mxu0 0.0
  %812 = vmatpush1.msra.mxu0 0.0
  %813 = vmatprep.subr.mxu0 0.0
  %814 = vmatpush1.msra.mxu0 0.0
  %815 = vmatprep.subr.mxu0 0.0
  %816 = vmatpush1.msra.mxu0 0.0
  %817 = vmatprep.subr.mxu0 0.0
  %818 = vmatpush1.msra.mxu0 0.0
  %819 = vmatprep.subr.mxu0 0.0
  %820 = vmatpush1.msra.mxu0 0.0
  %821 = vmatprep.subr.mxu0 0.0
  %822 = vmatpush1.msra.mxu0 0.0
  %823 = vmatprep.subr.mxu0 0.0
  %824 = vmatpush1.msra.mxu0 0.0
  %825 = vmatprep.subr.mxu0 0.0
  %826 = vmatpush1.msra.mxu0 0.0
  %827 = vmatprep.subr.mxu0 %v724
  %828 = vmatpush1.msra.mxu0 %v721
  %829 = vmatprep.subr.mxu0 0.0
  %830 = vmatpush2.msra.mxu0 0.0
  %831 = vmatprep.subr.mxu0 0.0
  %832 = vmatpush2.msra.mxu0 0.0
  %833 = vmatprep.subr.mxu0 0.0
  %834 = vmatpush2.msra.mxu0 0.0
  %835 = vmatprep.subr.mxu0 0.0
  %836 = vmatpush2.msra.mxu0 0.0
  %837 = vmatprep.subr.mxu0 0.0
  %838 = vmatpush2.msra.mxu0 0.0
  %839 = vmatprep.subr.mxu0 0.0
  %840 = vmatpush2.msra.mxu0 0.0
  %841 = vmatprep.subr.mxu0 0.0
  %842 = vmatpush2.msra.mxu0 0.0
  %843 = vmatprep.subr.mxu0 0.0
  %844 = vmatpush2.msra.mxu0 0.0
  %845 = vmatprep.subr.mxu0 0.0
  %846 = vmatpush2.msra.mxu0 0.0
  %847 = vmatprep.subr.mxu0 0.0
  %848 = vmatpush2.msra.mxu0 0.0
  %849 = vmatprep.subr.mxu0 0.0
  %850 = vmatpush2.msra.mxu0 0.0
  %851 = vmatprep.subr.mxu0 0.0
  %852 = vmatpush2.msra.mxu0 0.0
  %853 = vmatprep.subr.mxu0 0.0
  %854 = vmatpush2.msra.mxu0 0.0
  %855 = vmatprep.subr.mxu0 0.0
  %856 = vmatpush2.msra.mxu0 0.0
  %857 = vmatprep.subr.mxu0 0.0
  %858 = vmatpush2.msra.mxu0 0.0
  %859 = vmatprep.subr.mxu0 0.0
  %860 = vmatpush2.msra.mxu0 0.0
  %861 = vmatprep.mubr.f32.mxu0 0.0
  %862 = vmatmul.mubr.f32.gmra.mxu0 %v711
  %v863 = vpop.f32.mrf.mxu0
  %v864 = vadd.f32 %v708, %v863
  %v865 = vpop.f32.mrf.mxu0
  %v866 = vadd.f32 %v708, %v865
  %867 = vdwg.mxu0
  %v868 = vmul.f32 %v793, 0.01
  %v869 = vmul.f32 %v795, 0.01
  %v870 = vmul.f32 %v864, 0.01
  %v871 = vmul.f32 %v866, 0.01
  %v872 = vmax.f32 %v793, %v868
  %v873 = vmax.f32 %v795, %v869
  %v874 = vmax.f32 %v864, %v870
  %v875 = vmax.f32 %v866, %v871
  %v876 = vld [vmem:[%s4 + $0x20] sm:$0xf]
  %v877 = vld [vmem:[%s4 + $0x28] sm:$0xf]
  %v878 = vld [vmem:[%s4 + $0x30] sm:$0xff]
  %v879 = vadd.f32 %v387, %v388
  %880 = vadd.xlane.f32.xlu0 %v879
  %v881 = vpop.xlane.xlu0 %880
  %v882 = vrcp.pop 256.0
  %v883 = vmul.f32 %v881, %v882
  %v884 = vadd.f32 %v389, %v390
  %885 = vadd.xlane.f32.xlu0 %v884
  %v886 = vpop.xlane.xlu0 %885
  %v887 = vmul.f32 %v886, %v882
  %vm888 = vcmask 7168
  %v889 = vsel %vm888, %v883, %v887
  %v890 = vadd.f32 %v391, %v392
  %891 = vadd.xlane.f32.xlu0 %v890
  %v892 = vpop.xlane.xlu0 %891
  %v893 = vmul.f32 %v892, %v882
  %v894 = vadd.f32 %v393, %v394
  %895 = vadd.xlane.f32.xlu0 %v894
  %v896 = vpop.xlane.xlu0 %895
  %v897 = vmul.f32 %v896, %v882
  %v898 = vsel %vm888, %v893, %v897
  %v900 = vsel %vm398, %v877, 0
  %902 = vmatprep.subr.mxu0 0.0
  %903 = vmatpush1.msra.mxu0 0.0
  %904 = vmatprep.subr.mxu0 0.0
  %905 = vmatpush1.msra.mxu0 0.0
  %906 = vmatprep.subr.mxu0 0.0
  %907 = vmatpush1.msra.mxu0 0.0
  %908 = vmatprep.subr.mxu0 0.0
  %909 = vmatpush1.msra.mxu0 0.0
  %910 = vmatprep.subr.mxu0 0.0
  %911 = vmatpush1.msra.mxu0 0.0
  %912 = vmatprep.subr.mxu0 0.0
  %913 = vmatpush1.msra.mxu0 0.0
  %914 = vmatprep.subr.mxu0 0.0
  %915 = vmatpush1.msra.mxu0 0.0
  %916 = vmatprep.subr.mxu0 0.0
  %917 = vmatpush1.msra.mxu0 0.0
  %918 = vmatprep.subr.mxu0 0.0
  %919 = vmatpush1.msra.mxu0 0.0
  %920 = vmatprep.subr.mxu0 0.0
  %921 = vmatpush1.msra.mxu0 0.0
  %922 = vmatprep.subr.mxu0 0.0
  %923 = vmatpush1.msra.mxu0 0.0
  %924 = vmatprep.subr.mxu0 0.0
  %925 = vmatpush1.msra.mxu0 0.0
  %926 = vmatprep.subr.mxu0 0.0
  %927 = vmatpush1.msra.mxu0 0.0
  %928 = vmatprep.subr.mxu0 0.0
  %929 = vmatpush1.msra.mxu0 0.0
  %930 = vmatprep.subr.mxu0 0.0
  %931 = vmatpush1.msra.mxu0 0.0
  %932 = vmatprep.subr.mxu0 0.0
  %933 = vmatpush1.msra.mxu0 %v898
  %934 = vmatprep.subr.mxu0 0.0
  %935 = vmatpush2.msra.mxu0 0.0
  %936 = vmatprep.subr.mxu0 0.0
  %937 = vmatpush2.msra.mxu0 0.0
  %938 = vmatprep.subr.mxu0 0.0
  %939 = vmatpush2.msra.mxu0 0.0
  %940 = vmatprep.subr.mxu0 0.0
  %941 = vmatpush2.msra.mxu0 0.0
  %942 = vmatprep.subr.mxu0 0.0
  %943 = vmatpush2.msra.mxu0 0.0
  %944 = vmatprep.subr.mxu0 0.0
  %945 = vmatpush2.msra.mxu0 0.0
  %946 = vmatprep.subr.mxu0 0.0
  %947 = vmatpush2.msra.mxu0 0.0
  %948 = vmatprep.subr.mxu0 0.0
  %949 = vmatpush2.msra.mxu0 0.0
  %950 = vmatprep.subr.mxu0 0.0
  %951 = vmatpush2.msra.mxu0 0.0
  %952 = vmatprep.subr.mxu0 0.0
  %953 = vmatpush2.msra.mxu0 0.0
  %954 = vmatprep.subr.mxu0 0.0
  %955 = vmatpush2.msra.mxu0 0.0
  %956 = vmatprep.subr.mxu0 0.0
  %957 = vmatpush2.msra.mxu0 0.0
  %958 = vmatprep.subr.mxu0 0.0
  %959 = vmatpush2.msra.mxu0 0.0
  %960 = vmatprep.subr.mxu0 0.0
  %961 = vmatpush2.msra.mxu0 0.0
  %962 = vmatprep.subr.mxu0 0.0
  %963 = vmatpush2.msra.mxu0 0.0
  %964 = vmatprep.subr.mxu0 0.0
  %965 = vmatpush2.msra.mxu0 0.0
  %966 = vmatprep.mubr.f32.mxu0 0.0
  %967 = vmatmul.mubr.f32.gmra.mxu0 %v900
  %v968 = vpop.f32.mrf.mxu0
  %v969 = vadd.f32 0.0, %v968
  %v970 = vpop.f32.mrf.mxu0
  %971 = vdwg.mxu0
  %v973 = vsel %vm398, %v876, 0
  %975 = vmatprep.subr.mxu0 0.0
  %976 = vmatpush1.msra.mxu0 0.0
  %977 = vmatprep.subr.mxu0 0.0
  %978 = vmatpush1.msra.mxu0 0.0
  %979 = vmatprep.subr.mxu0 0.0
  %980 = vmatpush1.msra.mxu0 0.0
  %981 = vmatprep.subr.mxu0 0.0
  %982 = vmatpush1.msra.mxu0 0.0
  %983 = vmatprep.subr.mxu0 0.0
  %984 = vmatpush1.msra.mxu0 0.0
  %985 = vmatprep.subr.mxu0 0.0
  %986 = vmatpush1.msra.mxu0 0.0
  %987 = vmatprep.subr.mxu0 0.0
  %988 = vmatpush1.msra.mxu0 0.0
  %989 = vmatprep.subr.mxu0 0.0
  %990 = vmatpush1.msra.mxu0 0.0
  %991 = vmatprep.subr.mxu0 0.0
  %992 = vmatpush1.msra.mxu0 0.0
  %993 = vmatprep.subr.mxu0 0.0
  %994 = vmatpush1.msra.mxu0 0.0
  %995 = vmatprep.subr.mxu0 0.0
  %996 = vmatpush1.msra.mxu0 0.0
  %997 = vmatprep.subr.mxu0 0.0
  %998 = vmatpush1.msra.mxu0 0.0
  %999 = vmatprep.subr.mxu0 0.0
  %1000 = vmatpush1.msra.mxu0 0.0
  %1001 = vmatprep.subr.mxu0 0.0
  %1002 = vmatpush1.msra.mxu0 0.0
  %1003 = vmatprep.subr.mxu0 0.0
  %1004 = vmatpush1.msra.mxu0 0.0
  %1005 = vmatprep.subr.mxu0 0.0
  %1006 = vmatpush1.msra.mxu0 %v889
  %1007 = vmatprep.subr.mxu0 0.0
  %1008 = vmatpush2.msra.mxu0 0.0
  %1009 = vmatprep.subr.mxu0 0.0
  %1010 = vmatpush2.msra.mxu0 0.0
  %1011 = vmatprep.subr.mxu0 0.0
  %1012 = vmatpush2.msra.mxu0 0.0
  %1013 = vmatprep.subr.mxu0 0.0
  %1014 = vmatpush2.msra.mxu0 0.0
  %1015 = vmatprep.subr.mxu0 0.0
  %1016 = vmatpush2.msra.mxu0 0.0
  %1017 = vmatprep.subr.mxu0 0.0
  %1018 = vmatpush2.msra.mxu0 0.0
  %1019 = vmatprep.subr.mxu0 0.0
  %1020 = vmatpush2.msra.mxu0 0.0
  %1021 = vmatprep.subr.mxu0 0.0
  %1022 = vmatpush2.msra.mxu0 0.0
  %1023 = vmatprep.subr.mxu0 0.0
  %1024 = vmatpush2.msra.mxu0 0.0
  %1025 = vmatprep.subr.mxu0 0.0
  %1026 = vmatpush2.msra.mxu0 0.0
  %1027 = vmatprep.subr.mxu0 0.0
  %1028 = vmatpush2.msra.mxu0 0.0
  %1029 = vmatprep.subr.mxu0 0.0
  %1030 = vmatpush2.msra.mxu0 0.0
  %1031 = vmatprep.subr.mxu0 0.0
  %1032 = vmatpush2.msra.mxu0 0.0
  %1033 = vmatprep.subr.mxu0 0.0
  %1034 = vmatpush2.msra.mxu0 0.0
  %1035 = vmatprep.subr.mxu0 0.0
  %1036 = vmatpush2.msra.mxu0 0.0
  %1037 = vmatprep.subr.mxu0 0.0
  %1038 = vmatpush2.msra.mxu0 0.0
  %1039 = vmatprep.mubr.f32.mxu0 0.0
  %1040 = vmatmul.mubr.f32.gmra.mxu0 %v973
  %v1041 = vpop.f32.mrf.mxu0
  %v1042 = vadd.f32 %v969, %v1041
  %v1043 = vpop.f32.mrf.mxu0
  %1044 = vdwg.mxu0
  %1045 = vset.pattern.permute.xlu0 72
  %1046 = vperm.xlu0 %1045, %v876
  %v1047 = vpop.permute.xlu0 %1046
  %v1049 = vadd.f32 %v1042, %v1047
  %v1050 = vmul.f32 %v1049, 0.01
  %v1051 = vmax.f32 %v1049, %v1050
  %1053 = vset.pattern.permute.xlu0 72
  %1054 = vperm.xlu0 %1053, %v878
  %v1055 = vpop.permute.xlu0 %1054
  %v1057 = vsel %vm710, %v878, 0
  %v1060 = vsel %vm713, %v1051, 0
  %1062 = vmatprep.subr.mxu0 0.0
  %1063 = vmatpush1.msra.mxu0 0.0
  %1064 = vmatprep.subr.mxu0 0.0
  %1065 = vmatpush1.msra.mxu0 0.0
  %1066 = vmatprep.subr.mxu0 0.0
  %1067 = vmatpush1.msra.mxu0 0.0
  %1068 = vmatprep.subr.mxu0 0.0
  %1069 = vmatpush1.msra.mxu0 0.0
  %1070 = vmatprep.subr.mxu0 0.0
  %1071 = vmatpush1.msra.mxu0 0.0
  %1072 = vmatprep.subr.mxu0 0.0
  %1073 = vmatpush1.msra.mxu0 0.0
  %1074 = vmatprep.subr.mxu0 0.0
  %1075 = vmatpush1.msra.mxu0 0.0
  %1076 = vmatprep.subr.mxu0 0.0
  %1077 = vmatpush1.msra.mxu0 0.0
  %1078 = vmatprep.subr.mxu0 0.0
  %1079 = vmatpush1.msra.mxu0 0.0
  %1080 = vmatprep.subr.mxu0 0.0
  %1081 = vmatpush1.msra.mxu0 0.0
  %1082 = vmatprep.subr.mxu0 0.0
  %1083 = vmatpush1.msra.mxu0 0.0
  %1084 = vmatprep.subr.mxu0 0.0
  %1085 = vmatpush1.msra.mxu0 0.0
  %1086 = vmatprep.subr.mxu0 0.0
  %1087 = vmatpush1.msra.mxu0 0.0
  %1088 = vmatprep.subr.mxu0 0.0
  %1089 = vmatpush1.msra.mxu0 0.0
  %1090 = vmatprep.subr.mxu0 0.0
  %1091 = vmatpush1.msra.mxu0 0.0
  %1092 = vmatprep.subr.mxu0 0.0
  %1093 = vmatpush1.msra.mxu0 %v1060
  %1094 = vmatprep.subr.mxu0 0.0
  %1095 = vmatpush2.msra.mxu0 0.0
  %1096 = vmatprep.subr.mxu0 0.0
  %1097 = vmatpush2.msra.mxu0 0.0
  %1098 = vmatprep.subr.mxu0 0.0
  %1099 = vmatpush2.msra.mxu0 0.0
  %1100 = vmatprep.subr.mxu0 0.0
  %1101 = vmatpush2.msra.mxu0 0.0
  %1102 = vmatprep.subr.mxu0 0.0
  %1103 = vmatpush2.msra.mxu0 0.0
  %1104 = vmatprep.subr.mxu0 0.0
  %1105 = vmatpush2.msra.mxu0 0.0
  %1106 = vmatprep.subr.mxu0 0.0
  %1107 = vmatpush2.msra.mxu0 0.0
  %1108 = vmatprep.subr.mxu0 0.0
  %1109 = vmatpush2.msra.mxu0 0.0
  %1110 = vmatprep.subr.mxu0 0.0
  %1111 = vmatpush2.msra.mxu0 0.0
  %1112 = vmatprep.subr.mxu0 0.0
  %1113 = vmatpush2.msra.mxu0 0.0
  %1114 = vmatprep.subr.mxu0 0.0
  %1115 = vmatpush2.msra.mxu0 0.0
  %1116 = vmatprep.subr.mxu0 0.0
  %1117 = vmatpush2.msra.mxu0 0.0
  %1118 = vmatprep.subr.mxu0 0.0
  %1119 = vmatpush2.msra.mxu0 0.0
  %1120 = vmatprep.subr.mxu0 0.0
  %1121 = vmatpush2.msra.mxu0 0.0
  %1122 = vmatprep.subr.mxu0 0.0
  %1123 = vmatpush2.msra.mxu0 0.0
  %1124 = vmatprep.subr.mxu0 0.0
  %1125 = vmatpush2.msra.mxu0 0.0
  %1126 = vmatprep.mubr.f32.mxu0 0.0
  %1127 = vmatmul.mubr.f32.gmra.mxu0 %v1057
  %v1128 = vpop.f32.mrf.mxu0
  %v1129 = vadd.f32 %v1055, %v1128
  %v1130 = vpop.f32.mrf.mxu0
  %1131 = vdwg.mxu0
  %v1132 = vmul.f32 %v1129, 0.01
  %v1133 = vmax.f32 %v1129, %v1132
  %vm1134 = vcmask 15360
  %v1136 = vsel %vm1134, %v1133, 0
  %vm1138 = vcmask 1041408
  %v1140 = vsel %vm1138, %v156, 0
  %v1143 = vsel %vm1138, %v157, 0
  %v1146 = vsel %vm1138, %v158, 0
  %v1149 = vsel %vm1138, %v159, 0
  %1151 = vmatprep.subr.mxu0 0.0
  %1152 = vmatpush1.msra.mxu0 0.0
  %1153 = vmatprep.subr.mxu0 0.0
  %1154 = vmatpush1.msra.mxu0 0.0
  %1155 = vmatprep.subr.mxu0 0.0
  %1156 = vmatpush1.msra.mxu0 0.0
  %1157 = vmatprep.subr.mxu0 0.0
  %1158 = vmatpush1.msra.mxu0 0.0
  %1159 = vmatprep.subr.mxu0 0.0
  %1160 = vmatpush1.msra.mxu0 0.0
  %1161 = vmatprep.subr.mxu0 0.0
  %1162 = vmatpush1.msra.mxu0 0.0
  %1163 = vmatprep.subr.mxu0 0.0
  %1164 = vmatpush1.msra.mxu0 0.0
  %1165 = vmatprep.subr.mxu0 0.0
  %1166 = vmatpush1.msra.mxu0 0.0
  %1167 = vmatprep.subr.mxu0 0.0
  %1168 = vmatpush1.msra.mxu0 0.0
  %1169 = vmatprep.subr.mxu0 0.0
  %1170 = vmatpush1.msra.mxu0 0.0
  %1171 = vmatprep.subr.mxu0 0.0
  %1172 = vmatpush1.msra.mxu0 0.0
  %1173 = vmatprep.subr.mxu0 0.0
  %1174 = vmatpush1.msra.mxu0 0.0
  %1175 = vmatprep.subr.mxu0 0.0
  %1176 = vmatpush1.msra.mxu0 0.0
  %1177 = vmatprep.subr.mxu0 0.0
  %1178 = vmatpush1.msra.mxu0 0.0
  %1179 = vmatprep.subr.mxu0 0.0
  %1180 = vmatpush1.msra.mxu0 0.0
  %1181 = vmatprep.subr.mxu0 %v1143
  %1182 = vmatpush1.msra.mxu0 %v1140
  %1183 = vmatprep.subr.mxu0 0.0
  %1184 = vmatpush2.msra.mxu0 0.0
  %1185 = vmatprep.subr.mxu0 0.0
  %1186 = vmatpush2.msra.mxu0 0.0
  %1187 = vmatprep.subr.mxu0 0.0
  %1188 = vmatpush2.msra.mxu0 0.0
  %1189 = vmatprep.subr.mxu0 0.0
  %1190 = vmatpush2.msra.mxu0 0.0
  %1191 = vmatprep.subr.mxu0 0.0
  %1192 = vmatpush2.msra.mxu0 0.0
  %1193 = vmatprep.subr.mxu0 0.0
  %1194 = vmatpush2.msra.mxu0 0.0
  %1195 = vmatprep.subr.mxu0 0.0
  %1196 = vmatpush2.msra.mxu0 0.0
  %1197 = vmatprep.subr.mxu0 0.0
  %1198 = vmatpush2.msra.mxu0 0.0
  %1199 = vmatprep.subr.mxu0 0.0
  %1200 = vmatpush2.msra.mxu0 0.0
  %1201 = vmatprep.subr.mxu0 0.0
  %1202 = vmatpush2.msra.mxu0 0.0
  %1203 = vmatprep.subr.mxu0 0.0
  %1204 = vmatpush2.msra.mxu0 0.0
  %1205 = vmatprep.subr.mxu0 0.0
  %1206 = vmatpush2.msra.mxu0 0.0
  %1207 = vmatprep.subr.mxu0 0.0
  %1208 = vmatpush2.msra.mxu0 0.0
  %1209 = vmatprep.subr.mxu0 0.0
  %1210 = vmatpush2.msra.mxu0 0.0
  %1211 = vmatprep.subr.mxu0 0.0
  %1212 = vmatpush2.msra.mxu0 0.0
  %1213 = vmatprep.subr.mxu0 0.0
  %1214 = vmatpush2.msra.mxu0 0.0
  %1215 = vmatprep.mubr.f32.mxu0 0.0
  %1216 = vmatmul.mubr.f32.gmra.mxu0 %v1136
  %v1217 = vpop.f32.mrf.mxu0
  %v1218 = vadd.f32 0.0, %v1217
  %v1219 = vpop.f32.mrf.mxu0
  %v1220 = vadd.f32 0.0, %v1219
  %1221 = vdwg.mxu0
  %1222 = vmatprep.subr.mxu0 0.0
  %1223 = vmatpush1.msra.mxu0 0.0
  %1224 = vmatprep.subr.mxu0 0.0
  %1225 = vmatpush1.msra.mxu0 0.0
  %1226 = vmatprep.subr.mxu0 0.0
  %1227 = vmatpush1.msra.mxu0 0.0
  %1228 = vmatprep.subr.mxu0 0.0
  %1229 = vmatpush1.msra.mxu0 0.0
  %1230 = vmatprep.subr.mxu0 0.0
  %1231 = vmatpush1.msra.mxu0 0.0
  %1232 = vmatprep.subr.mxu0 0.0
  %1233 = vmatpush1.msra.mxu0 0.0
  %1234 = vmatprep.subr.mxu0 0.0
  %1235 = vmatpush1.msra.mxu0 0.0
  %1236 = vmatprep.subr.mxu0 0.0
  %1237 = vmatpush1.msra.mxu0 0.0
  %1238 = vmatprep.subr.mxu0 0.0
  %1239 = vmatpush1.msra.mxu0 0.0
  %1240 = vmatprep.subr.mxu0 0.0
  %1241 = vmatpush1.msra.mxu0 0.0
  %1242 = vmatprep.subr.mxu0 0.0
  %1243 = vmatpush1.msra.mxu0 0.0
  %1244 = vmatprep.subr.mxu0 0.0
  %1245 = vmatpush1.msra.mxu0 0.0
  %1246 = vmatprep.subr.mxu0 0.0
  %1247 = vmatpush1.msra.mxu0 0.0
  %1248 = vmatprep.subr.mxu0 0.0
  %1249 = vmatpush1.msra.mxu0 0.0
  %1250 = vmatprep.subr.mxu0 0.0
  %1251 = vmatpush1.msra.mxu0 0.0
  %1252 = vmatprep.subr.mxu0 %v1149
  %1253 = vmatpush1.msra.mxu0 %v1146
  %1254 = vmatprep.subr.mxu0 0.0
  %1255 = vmatpush2.msra.mxu0 0.0
  %1256 = vmatprep.subr.mxu0 0.0
  %1257 = vmatpush2.msra.mxu0 0.0
  %1258 = vmatprep.subr.mxu0 0.0
  %1259 = vmatpush2.msra.mxu0 0.0
  %1260 = vmatprep.subr.mxu0 0.0
  %1261 = vmatpush2.msra.mxu0 0.0
  %1262 = vmatprep.subr.mxu0 0.0
  %1263 = vmatpush2.msra.mxu0 0.0
  %1264 = vmatprep.subr.mxu0 0.0
  %1265 = vmatpush2.msra.mxu0 0.0
  %1266 = vmatprep.subr.mxu0 0.0
  %1267 = vmatpush2.msra.mxu0 0.0
  %1268 = vmatprep.subr.mxu0 0.0
  %1269 = vmatpush2.msra.mxu0 0.0
  %1270 = vmatprep.subr.mxu0 0.0
  %1271 = vmatpush2.msra.mxu0 0.0
  %1272 = vmatprep.subr.mxu0 0.0
  %1273 = vmatpush2.msra.mxu0 0.0
  %1274 = vmatprep.subr.mxu0 0.0
  %1275 = vmatpush2.msra.mxu0 0.0
  %1276 = vmatprep.subr.mxu0 0.0
  %1277 = vmatpush2.msra.mxu0 0.0
  %1278 = vmatprep.subr.mxu0 0.0
  %1279 = vmatpush2.msra.mxu0 0.0
  %1280 = vmatprep.subr.mxu0 0.0
  %1281 = vmatpush2.msra.mxu0 0.0
  %1282 = vmatprep.subr.mxu0 0.0
  %1283 = vmatpush2.msra.mxu0 0.0
  %1284 = vmatprep.subr.mxu0 0.0
  %1285 = vmatpush2.msra.mxu0 0.0
  %1286 = vmatprep.mubr.f32.mxu0 0.0
  %1287 = vmatmul.mubr.f32.gmra.mxu0 %v1136
  %v1288 = vpop.f32.mrf.mxu0
  %v1289 = vadd.f32 0.0, %v1288
  %v1290 = vpop.f32.mrf.mxu0
  %v1291 = vadd.f32 0.0, %v1290
  %1292 = vdwg.mxu0
  %v1293 = vadd.f32 %v872, %v1218
  %v1294 = vadd.f32 %v873, %v1220
  %v1295 = vadd.f32 %v874, %v1289
  %v1296 = vadd.f32 %v875, %v1291
  %v1297 = vxor.u32 %v1293, 2147483648
  %v1298 = vxor.u32 %v1294, 2147483648
  %v1299 = vxor.u32 %v1295, 2147483648
  %v1300 = vxor.u32 %v1296, 2147483648
  %v1301 = vmul.f32 %v1297, 1.442695
  %v1302 = vpow.pop %v1301
  %v1303 = vmul.f32 %v1298, 1.442695
  %v1304 = vpow.pop %v1303
  %v1305 = vmul.f32 %v1299, 1.442695
  %v1306 = vpow.pop %v1305
  %v1307 = vmul.f32 %v1300, 1.442695
  %v1308 = vpow.pop %v1307
  %v1309 = vadd.f32 %v1302, 1.0
  %v1310 = vadd.f32 %v1304, 1.0
  %v1311 = vadd.f32 %v1306, 1.0
  %v1312 = vadd.f32 %v1308, 1.0
  %v1313 = vrcp.pop %v1309
  %v1314 = vmul.f32 1.0, %v1313
  %v1315 = vrcp.pop %v1310
  %v1316 = vmul.f32 1.0, %v1315
  %v1317 = vrcp.pop %v1311
  %v1318 = vmul.f32 1.0, %v1317
  %v1319 = vrcp.pop %v1312
  %v1320 = vmul.f32 1.0, %v1319
  %v1321 = vmul.f32 %v387, %v1314
  %v1322 = vmul.f32 %v388, %v1316
  %v1323 = vmul.f32 %v389, %v1318
  %v1324 = vmul.f32 %v390, %v1320
  %v1325 = vsub.f32 1.0, %v1314
  %v1326 = vsub.f32 1.0, %v1316
  %v1327 = vsub.f32 1.0, %v1318
  %v1328 = vsub.f32 1.0, %v1320
  %v1329 = vmul.f32 %v391, %v1325
  %v1330 = vmul.f32 %v392, %v1326
  %v1331 = vmul.f32 %v393, %v1327
  %v1332 = vmul.f32 %v394, %v1328
  %v1333 = vadd.f32 %v1321, %v1329
  %v1334 = vadd.f32 %v1322, %v1330
  %v1335 = vadd.f32 %v1323, %v1331
  %v1336 = vadd.f32 %v1324, %v1332
  %v1337 = vld [vmem:[%s4 + $0x40] sm:$0xff]
  %1338 = vrot.lane.b32.xlu0 %v1333, 17
  %v1339 = vpop.permute.xlu0 %1338
  %1340 = vrot.lane.b32.xlu0 %v1334, 17
  %v1341 = vpop.permute.xlu0 %1340
  %1342 = vrot.lane.b32.xlu0 %v1335, 17
  %v1343 = vpop.permute.xlu0 %1342
  %1344 = vrot.lane.b32.xlu0 %v1336, 17
  %v1345 = vpop.permute.xlu0 %1344
  %v1346 = vlaneseq
  %v1347 = vand.u32 %v1346, 127
  %vm1348 = vcmp.lt.s32.totalorder %v1347, 17
  %v1349 = vsel %vm1348, %v1343, %v1345
  %v1350 = vsel %vm1348, %v1341, %v1343
  %v1351 = vsel %vm1348, %v1339, %v1341
  %v1352 = vsel %vm1348, %v1345, %v1339
  %v1353 = vlaneseq
  %v1354 = vshrl.u32 %v1353, 7
  %v1355 = vsub.s32 0, %v1354
  %v1356 = vrot.slane %v148, %v1355
  %v1357 = vlaneseq
  %v1358 = vshrl.u32 %v1357, 7
  %v1359 = vsub.s32 0, %v1358
  %v1360 = vrot.slane %v149, %v1359
  %v1361 = vlaneseq
  %v1362 = vshrl.u32 %v1361, 7
  %v1363 = vsub.s32 0, %v1362
  %v1364 = vrot.slane %v150, %v1363
  %v1365 = vlaneseq
  %v1366 = vshrl.u32 %v1365, 7
  %v1367 = vsub.s32 0, %v1366
  %v1368 = vrot.slane %v151, %v1367
  %v1369 = vmul.f32 %v1352, %v1356
  %v1370 = vmul.f32 %v1351, %v1360
  %v1371 = vmul.f32 %v1350, %v1364
  %v1372 = vmul.f32 %v1349, %v1368
  %1373 = vrot.lane.b32.xlu0 %v1333, 16
  %v1374 = vpop.permute.xlu0 %1373
  %1375 = vrot.lane.b32.xlu0 %v1334, 16
  %v1376 = vpop.permute.xlu0 %1375
  %1377 = vrot.lane.b32.xlu0 %v1335, 16
  %v1378 = vpop.permute.xlu0 %1377
  %1379 = vrot.lane.b32.xlu0 %v1336, 16
  %v1380 = vpop.permute.xlu0 %1379
  %vm1381 = vcmp.lt.s32.totalorder %v1347, 16
  %v1382 = vsel %vm1381, %v1378, %v1380
  %v1383 = vsel %vm1381, %v1376, %v1378
  %v1384 = vsel %vm1381, %v1374, %v1376
  %v1385 = vsel %vm1381, %v1380, %v1374
  %v1386 = vlaneseq
  %v1387 = vshrl.u32 %v1386, 7
  %v1388 = vsub.s32 1, %v1387
  %v1389 = vrot.slane %v148, %v1388
  %v1390 = vlaneseq
  %v1391 = vshrl.u32 %v1390, 7
  %v1392 = vsub.s32 1, %v1391
  %v1393 = vrot.slane %v149, %v1392
  %v1394 = vlaneseq
  %v1395 = vshrl.u32 %v1394, 7
  %v1396 = vsub.s32 1, %v1395
  %v1397 = vrot.slane %v150, %v1396
  %v1398 = vlaneseq
  %v1399 = vshrl.u32 %v1398, 7
  %v1400 = vsub.s32 1, %v1399
  %v1401 = vrot.slane %v151, %v1400
  %v1402 = vmul.f32 %v1385, %v1389
  %v1403 = vmul.f32 %v1384, %v1393
  %v1404 = vmul.f32 %v1383, %v1397
  %v1405 = vmul.f32 %v1382, %v1401
  %1406 = vrot.lane.b32.xlu0 %v1333, 15
  %v1407 = vpop.permute.xlu0 %1406
  %1408 = vrot.lane.b32.xlu0 %v1334, 15
  %v1409 = vpop.permute.xlu0 %1408
  %1410 = vrot.lane.b32.xlu0 %v1335, 15
  %v1411 = vpop.permute.xlu0 %1410
  %1412 = vrot.lane.b32.xlu0 %v1336, 15
  %v1413 = vpop.permute.xlu0 %1412
  %vm1414 = vcmp.lt.s32.totalorder %v1347, 15
  %v1415 = vsel %vm1414, %v1411, %v1413
  %v1416 = vsel %vm1414, %v1409, %v1411
  %v1417 = vsel %vm1414, %v1407, %v1409
  %v1418 = vsel %vm1414, %v1413, %v1407
  %v1419 = vlaneseq
  %v1420 = vshrl.u32 %v1419, 7
  %v1421 = vsub.s32 2, %v1420
  %v1422 = vrot.slane %v148, %v1421
  %v1423 = vlaneseq
  %v1424 = vshrl.u32 %v1423, 7
  %v1425 = vsub.s32 2, %v1424
  %v1426 = vrot.slane %v149, %v1425
  %v1427 = vlaneseq
  %v1428 = vshrl.u32 %v1427, 7
  %v1429 = vsub.s32 2, %v1428
  %v1430 = vrot.slane %v150, %v1429
  %v1431 = vlaneseq
  %v1432 = vshrl.u32 %v1431, 7
  %v1433 = vsub.s32 2, %v1432
  %v1434 = vrot.slane %v151, %v1433
  %v1435 = vmul.f32 %v1418, %v1422
  %v1436 = vmul.f32 %v1417, %v1426
  %v1437 = vmul.f32 %v1416, %v1430
  %v1438 = vmul.f32 %v1415, %v1434
  %1439 = vrot.lane.b32.xlu0 %v1333, 1
  %v1440 = vpop.permute.xlu0 %1439
  %1441 = vrot.lane.b32.xlu0 %v1334, 1
  %v1442 = vpop.permute.xlu0 %1441
  %1443 = vrot.lane.b32.xlu0 %v1335, 1
  %v1444 = vpop.permute.xlu0 %1443
  %1445 = vrot.lane.b32.xlu0 %v1336, 1
  %v1446 = vpop.permute.xlu0 %1445
  %vm1447 = vcmp.lt.s32.totalorder %v1347, 1
  %v1448 = vsel %vm1447, %v1444, %v1446
  %v1449 = vsel %vm1447, %v1442, %v1444
  %v1450 = vsel %vm1447, %v1440, %v1442
  %v1451 = vsel %vm1447, %v1446, %v1440
  %v1452 = vlaneseq
  %v1453 = vshrl.u32 %v1452, 7
  %v1454 = vsub.s32 3, %v1453
  %v1455 = vrot.slane %v148, %v1454
  %v1456 = vlaneseq
  %v1457 = vshrl.u32 %v1456, 7
  %v1458 = vsub.s32 3, %v1457
  %v1459 = vrot.slane %v149, %v1458
  %v1460 = vlaneseq
  %v1461 = vshrl.u32 %v1460, 7
  %v1462 = vsub.s32 3, %v1461
  %v1463 = vrot.slane %v150, %v1462
  %v1464 = vlaneseq
  %v1465 = vshrl.u32 %v1464, 7
  %v1466 = vsub.s32 3, %v1465
  %v1467 = vrot.slane %v151, %v1466
  %v1468 = vmul.f32 %v1451, %v1455
  %v1469 = vmul.f32 %v1450, %v1459
  %v1470 = vmul.f32 %v1449, %v1463
  %v1471 = vmul.f32 %v1448, %v1467
  %1472 = vrot.lane.b32.xlu0 %v1333, 127
  %v1473 = vpop.permute.xlu0 %1472
  %1474 = vrot.lane.b32.xlu0 %v1334, 127
  %v1475 = vpop.permute.xlu0 %1474
  %1476 = vrot.lane.b32.xlu0 %v1335, 127
  %v1477 = vpop.permute.xlu0 %1476
  %1478 = vrot.lane.b32.xlu0 %v1336, 127
  %v1479 = vpop.permute.xlu0 %1478
  %vm1480 = vcmp.lt.s32.totalorder %v1347, 127
  %v1481 = vsel %vm1480, %v1477, %v1479
  %v1482 = vsel %vm1480, %v1475, %v1477
  %v1483 = vsel %vm1480, %v1473, %v1475
  %v1484 = vsel %vm1480, %v1479, %v1473
  %v1485 = vlaneseq
  %v1486 = vshrl.u32 %v1485, 7
  %v1487 = vsub.s32 5, %v1486
  %v1488 = vrot.slane %v148, %v1487
  %v1489 = vlaneseq
  %v1490 = vshrl.u32 %v1489, 7
  %v1491 = vsub.s32 5, %v1490
  %v1492 = vrot.slane %v149, %v1491
  %v1493 = vlaneseq
  %v1494 = vshrl.u32 %v1493, 7
  %v1495 = vsub.s32 5, %v1494
  %v1496 = vrot.slane %v150, %v1495
  %v1497 = vlaneseq
  %v1498 = vshrl.u32 %v1497, 7
  %v1499 = vsub.s32 5, %v1498
  %v1500 = vrot.slane %v151, %v1499
  %v1501 = vmul.f32 %v1483, %v1488
  %v1502 = vmul.f32 %v1482, %v1492
  %v1503 = vmul.f32 %v1481, %v1496
  %v1504 = vmul.f32 %v1484, %v1500
  %1505 = vrot.lane.b32.xlu0 %v1333, 113
  %v1506 = vpop.permute.xlu0 %1505
  %1507 = vrot.lane.b32.xlu0 %v1334, 113
  %v1508 = vpop.permute.xlu0 %1507
  %1509 = vrot.lane.b32.xlu0 %v1335, 113
  %v1510 = vpop.permute.xlu0 %1509
  %1511 = vrot.lane.b32.xlu0 %v1336, 113
  %v1512 = vpop.permute.xlu0 %1511
  %vm1513 = vcmp.lt.s32.totalorder %v1347, 113
  %v1514 = vsel %vm1513, %v1510, %v1512
  %v1515 = vsel %vm1513, %v1508, %v1510
  %v1516 = vsel %vm1513, %v1506, %v1508
  %v1517 = vsel %vm1513, %v1512, %v1506
  %v1518 = vlaneseq
  %v1519 = vshrl.u32 %v1518, 7
  %v1520 = vsub.s32 6, %v1519
  %v1521 = vrot.slane %v148, %v1520
  %v1522 = vlaneseq
  %v1523 = vshrl.u32 %v1522, 7
  %v1524 = vsub.s32 6, %v1523
  %v1525 = vrot.slane %v149, %v1524
  %v1526 = vlaneseq
  %v1527 = vshrl.u32 %v1526, 7
  %v1528 = vsub.s32 6, %v1527
  %v1529 = vrot.slane %v150, %v1528
  %v1530 = vlaneseq
  %v1531 = vshrl.u32 %v1530, 7
  %v1532 = vsub.s32 6, %v1531
  %v1533 = vrot.slane %v151, %v1532
  %v1534 = vmul.f32 %v1516, %v1521
  %v1535 = vmul.f32 %v1515, %v1525
  %v1536 = vmul.f32 %v1514, %v1529
  %v1537 = vmul.f32 %v1517, %v1533
  %1538 = vrot.lane.b32.xlu0 %v1333, 112
  %v1539 = vpop.permute.xlu0 %1538
  %1540 = vrot.lane.b32.xlu0 %v1334, 112
  %v1541 = vpop.permute.xlu0 %1540
  %1542 = vrot.lane.b32.xlu0 %v1335, 112
  %v1543 = vpop.permute.xlu0 %1542
  %1544 = vrot.lane.b32.xlu0 %v1336, 112
  %v1545 = vpop.permute.xlu0 %1544
  %vm1546 = vcmp.lt.s32.totalorder %v1347, 112
  %v1547 = vsel %vm1546, %v1543, %v1545
  %v1548 = vsel %vm1546, %v1541, %v1543
  %v1549 = vsel %vm1546, %v1539, %v1541
  %v1550 = vsel %vm1546, %v1545, %v1539
  %v1551 = vlaneseq
  %v1552 = vshrl.u32 %v1551, 7
  %v1553 = vsub.s32 7, %v1552
  %v1554 = vrot.slane %v148, %v1553
  %v1555 = vlaneseq
  %v1556 = vshrl.u32 %v1555, 7
  %v1557 = vsub.s32 7, %v1556
  %v1558 = vrot.slane %v149, %v1557
  %v1559 = vlaneseq
  %v1560 = vshrl.u32 %v1559, 7
  %v1561 = vsub.s32 7, %v1560
  %v1562 = vrot.slane %v150, %v1561
  %v1563 = vlaneseq
  %v1564 = vshrl.u32 %v1563, 7
  %v1565 = vsub.s32 7, %v1564
  %v1566 = vrot.slane %v151, %v1565
  %v1567 = vmul.f32 %v1549, %v1554
  %v1568 = vmul.f32 %v1548, %v1558
  %v1569 = vmul.f32 %v1547, %v1562
  %v1570 = vmul.f32 %v1550, %v1566
  %1571 = vrot.lane.b32.xlu0 %v1333, 111
  %v1572 = vpop.permute.xlu0 %1571
  %1573 = vrot.lane.b32.xlu0 %v1334, 111
  %v1574 = vpop.permute.xlu0 %1573
  %1575 = vrot.lane.b32.xlu0 %v1335, 111
  %v1576 = vpop.permute.xlu0 %1575
  %1577 = vrot.lane.b32.xlu0 %v1336, 111
  %v1578 = vpop.permute.xlu0 %1577
  %vm1579 = vcmp.lt.s32.totalorder %v1347, 111
  %v1580 = vsel %vm1579, %v1576, %v1578
  %v1581 = vsel %vm1579, %v1574, %v1576
  %v1582 = vsel %vm1579, %v1572, %v1574
  %v1583 = vsel %vm1579, %v1578, %v1572
  %v1584 = vlaneseq
  %v1585 = vshrl.u32 %v1584, 7
  %v1586 = vsub.s32 0, %v1585
  %v1587 = vrot.slane %v152, %v1586
  %v1588 = vlaneseq
  %v1589 = vshrl.u32 %v1588, 7
  %v1590 = vsub.s32 0, %v1589
  %v1591 = vrot.slane %v153, %v1590
  %v1592 = vlaneseq
  %v1593 = vshrl.u32 %v1592, 7
  %v1594 = vsub.s32 0, %v1593
  %v1595 = vrot.slane %v154, %v1594
  %v1596 = vlaneseq
  %v1597 = vshrl.u32 %v1596, 7
  %v1598 = vsub.s32 0, %v1597
  %v1599 = vrot.slane %v155, %v1598
  %v1600 = vmul.f32 %v1582, %v1587
  %v1601 = vmul.f32 %v1581, %v1591
  %v1602 = vmul.f32 %v1580, %v1595
  %v1603 = vmul.f32 %v1583, %v1599
  %1605 = vset.pattern.permute.xlu0 72
  %1606 = vperm.xlu0 %1605, %v1337
  %v1607 = vpop.permute.xlu0 %1606
  %vm1609 = vcmask 588800
  %v1610 = vsel %vm1609, %v1337, 0
  %1612 = vmatprep.subr.mxu0 0.0
  %1613 = vmatpush1.msra.mxu0 0.0
  %1614 = vmatprep.subr.mxu0 0.0
  %1615 = vmatpush1.msra.mxu0 0.0
  %1616 = vmatprep.subr.mxu0 0.0
  %1617 = vmatpush1.msra.mxu0 0.0
  %1618 = vmatprep.subr.mxu0 0.0
  %1619 = vmatpush1.msra.mxu0 0.0
  %1620 = vmatprep.subr.mxu0 0.0
  %1621 = vmatpush1.msra.mxu0 0.0
  %1622 = vmatprep.subr.mxu0 0.0
  %1623 = vmatpush1.msra.mxu0 0.0
  %1624 = vmatprep.subr.mxu0 0.0
  %1625 = vmatpush1.msra.mxu0 0.0
  %1626 = vmatprep.subr.mxu0 %v1601
  %1627 = vmatpush1.msra.mxu0 %v1600
  %1628 = vmatprep.subr.mxu0 %v1568
  %1629 = vmatpush1.msra.mxu0 %v1567
  %1630 = vmatprep.subr.mxu0 %v1535
  %1631 = vmatpush1.msra.mxu0 %v1534
  %1632 = vmatprep.subr.mxu0 %v1502
  %1633 = vmatpush1.msra.mxu0 %v1501
  %1634 = vmatprep.subr.mxu0 %v1334
  %1635 = vmatpush1.msra.mxu0 %v1333
  %1636 = vmatprep.subr.mxu0 %v1469
  %1637 = vmatpush1.msra.mxu0 %v1468
  %1638 = vmatprep.subr.mxu0 %v1436
  %1639 = vmatpush1.msra.mxu0 %v1435
  %1640 = vmatprep.subr.mxu0 %v1403
  %1641 = vmatpush1.msra.mxu0 %v1402
  %1642 = vmatprep.subr.mxu0 %v1370
  %1643 = vmatpush1.msra.mxu0 %v1369
  %1644 = vmatprep.subr.mxu0 0.0
  %1645 = vmatpush2.msra.mxu0 0.0
  %1646 = vmatprep.subr.mxu0 0.0
  %1647 = vmatpush2.msra.mxu0 0.0
  %1648 = vmatprep.subr.mxu0 0.0
  %1649 = vmatpush2.msra.mxu0 0.0
  %1650 = vmatprep.subr.mxu0 0.0
  %1651 = vmatpush2.msra.mxu0 0.0
  %1652 = vmatprep.subr.mxu0 0.0
  %1653 = vmatpush2.msra.mxu0 0.0
  %1654 = vmatprep.subr.mxu0 0.0
  %1655 = vmatpush2.msra.mxu0 0.0
  %1656 = vmatprep.subr.mxu0 0.0
  %1657 = vmatpush2.msra.mxu0 0.0
  %1658 = vmatprep.subr.mxu0 0.0
  %1659 = vmatpush2.msra.mxu0 0.0
  %1660 = vmatprep.subr.mxu0 0.0
  %1661 = vmatpush2.msra.mxu0 0.0
  %1662 = vmatprep.subr.mxu0 0.0
  %1663 = vmatpush2.msra.mxu0 0.0
  %1664 = vmatprep.subr.mxu0 0.0
  %1665 = vmatpush2.msra.mxu0 0.0
  %1666 = vmatprep.subr.mxu0 0.0
  %1667 = vmatpush2.msra.mxu0 0.0
  %1668 = vmatprep.subr.mxu0 0.0
  %1669 = vmatpush2.msra.mxu0 0.0
  %1670 = vmatprep.subr.mxu0 0.0
  %1671 = vmatpush2.msra.mxu0 0.0
  %1672 = vmatprep.subr.mxu0 0.0
  %1673 = vmatpush2.msra.mxu0 0.0
  %1674 = vmatprep.subr.mxu0 0.0
  %1675 = vmatpush2.msra.mxu0 0.0
  %1676 = vmatprep.mubr.f32.mxu0 0.0
  %1677 = vmatmul.mubr.f32.gmra.mxu0 %v1610
  %v1678 = vpop.f32.mrf.mxu0
  %v1679 = vadd.f32 %v1607, %v1678
  %v1680 = vpop.f32.mrf.mxu0
  %v1681 = vadd.f32 %v1607, %v1680
  %1682 = vdwg.mxu0
  %1683 = vmatprep.subr.mxu0 0.0
  %1684 = vmatpush1.msra.mxu0 0.0
  %1685 = vmatprep.subr.mxu0 0.0
  %1686 = vmatpush1.msra.mxu0 0.0
  %1687 = vmatprep.subr.mxu0 0.0
  %1688 = vmatpush1.msra.mxu0 0.0
  %1689 = vmatprep.subr.mxu0 0.0
  %1690 = vmatpush1.msra.mxu0 0.0
  %1691 = vmatprep.subr.mxu0 0.0
  %1692 = vmatpush1.msra.mxu0 0.0
  %1693 = vmatprep.subr.mxu0 0.0
  %1694 = vmatpush1.msra.mxu0 0.0
  %1695 = vmatprep.subr.mxu0 0.0
  %1696 = vmatpush1.msra.mxu0 0.0
  %1697 = vmatprep.subr.mxu0 %v1603
  %1698 = vmatpush1.msra.mxu0 %v1602
  %1699 = vmatprep.subr.mxu0 %v1570
  %1700 = vmatpush1.msra.mxu0 %v1569
  %1701 = vmatprep.subr.mxu0 %v1537
  %1702 = vmatpush1.msra.mxu0 %v1536
  %1703 = vmatprep.subr.mxu0 %v1504
  %1704 = vmatpush1.msra.mxu0 %v1503
  %1705 = vmatprep.subr.mxu0 %v1336
  %1706 = vmatpush1.msra.mxu0 %v1335
  %1707 = vmatprep.subr.mxu0 %v1471
  %1708 = vmatpush1.msra.mxu0 %v1470
  %1709 = vmatprep.subr.mxu0 %v1438
  %1710 = vmatpush1.msra.mxu0 %v1437
  %1711 = vmatprep.subr.mxu0 %v1405
  %1712 = vmatpush1.msra.mxu0 %v1404
  %1713 = vmatprep.subr.mxu0 %v1372
  %1714 = vmatpush1.msra.mxu0 %v1371
  %1715 = vmatprep.subr.mxu0 0.0
  %1716 = vmatpush2.msra.mxu0 0.0
  %1717 = vmatprep.subr.mxu0 0.0
  %1718 = vmatpush2.msra.mxu0 0.0
  %1719 = vmatprep.subr.mxu0 0.0
  %1720 = vmatpush2.msra.mxu0 0.0
  %1721 = vmatprep.subr.mxu0 0.0
  %1722 = vmatpush2.msra.mxu0 0.0
  %1723 = vmatprep.subr.mxu0 0.0
  %1724 = vmatpush2.msra.mxu0 0.0
  %1725 = vmatprep.subr.mxu0 0.0
  %1726 = vmatpush2.msra.mxu0 0.0
  %1727 = vmatprep.subr.mxu0 0.0
  %1728 = vmatpush2.msra.mxu0 0.0
  %1729 = vmatprep.subr.mxu0 0.0
  %1730 = vmatpush2.msra.mxu0 0.0
  %1731 = vmatprep.subr.mxu0 0.0
  %1732 = vmatpush2.msra.mxu0 0.0
  %1733 = vmatprep.subr.mxu0 0.0
  %1734 = vmatpush2.msra.mxu0 0.0
  %1735 = vmatprep.subr.mxu0 0.0
  %1736 = vmatpush2.msra.mxu0 0.0
  %1737 = vmatprep.subr.mxu0 0.0
  %1738 = vmatpush2.msra.mxu0 0.0
  %1739 = vmatprep.subr.mxu0 0.0
  %1740 = vmatpush2.msra.mxu0 0.0
  %1741 = vmatprep.subr.mxu0 0.0
  %1742 = vmatpush2.msra.mxu0 0.0
  %1743 = vmatprep.subr.mxu0 0.0
  %1744 = vmatpush2.msra.mxu0 0.0
  %1745 = vmatprep.subr.mxu0 0.0
  %1746 = vmatpush2.msra.mxu0 0.0
  %1747 = vmatprep.mubr.f32.mxu0 0.0
  %1748 = vmatmul.mubr.f32.gmra.mxu0 %v1610
  %v1749 = vpop.f32.mrf.mxu0
  %v1750 = vadd.f32 %v1607, %v1749
  %v1751 = vpop.f32.mrf.mxu0
  %v1752 = vadd.f32 %v1607, %v1751
  %1753 = vdwg.mxu0
  %v1754 = vmul.f32 %v1679, 0.01
  %v1755 = vmul.f32 %v1681, 0.01
  %v1756 = vmul.f32 %v1750, 0.01
  %v1757 = vmul.f32 %v1752, 0.01
  %v1758 = vmax.f32 %v1679, %v1754
  %v1759 = vmax.f32 %v1681, %v1755
  %v1760 = vmax.f32 %v1750, %v1756
  %v1761 = vmax.f32 %v1752, %v1757
  %v1762 = vld [vmem:[%s4 + $0x38] sm:$0xff]
  %v1763 = vld [vmem:[%s2] sm:$0xf]
  %1764 = vmatprep.subr.mxu0 %v145
  %1765 = vmatpush1.msra.mxu0 %v144
  %1766 = vmatprep.subr.mxu0 %v141
  %1767 = vmatpush1.msra.mxu0 %v140
  %1768 = vmatprep.subr.mxu0 %v137
  %1769 = vmatpush1.msra.mxu0 %v136
  %1770 = vmatprep.subr.mxu0 %v133
  %1771 = vmatpush1.msra.mxu0 %v132
  %1772 = vmatprep.subr.mxu0 %v129
  %1773 = vmatpush1.msra.mxu0 %v128
  %1774 = vmatprep.subr.mxu0 %v125
  %1775 = vmatpush1.msra.mxu0 %v124
  %1776 = vmatprep.subr.mxu0 %v121
  %1777 = vmatpush1.msra.mxu0 %v120
  %1778 = vmatprep.subr.mxu0 %v117
  %1779 = vmatpush1.msra.mxu0 %v116
  %1780 = vmatprep.subr.mxu0 %v113
  %1781 = vmatpush1.msra.mxu0 %v112
  %1782 = vmatprep.subr.mxu0 %v109
  %1783 = vmatpush1.msra.mxu0 %v108
  %1784 = vmatprep.subr.mxu0 %v105
  %1785 = vmatpush1.msra.mxu0 %v104
  %1786 = vmatprep.subr.mxu0 %v101
  %1787 = vmatpush1.msra.mxu0 %v100
  %1788 = vmatprep.subr.mxu0 %v97
  %1789 = vmatpush1.msra.mxu0 %v96
  %1790 = vmatprep.subr.mxu0 %v93
  %1791 = vmatpush1.msra.mxu0 %v92
  %1792 = vmatprep.subr.mxu0 %v89
  %1793 = vmatpush1.msra.mxu0 %v88
  %1794 = vmatprep.subr.mxu0 %v85
  %1795 = vmatpush1.msra.mxu0 %v84
  %1796 = vmatprep.subr.mxu0 0.0
  %1797 = vmatpush2.msra.mxu0 0.0
  %1798 = vmatprep.subr.mxu0 0.0
  %1799 = vmatpush2.msra.mxu0 0.0
  %1800 = vmatprep.subr.mxu0 0.0
  %1801 = vmatpush2.msra.mxu0 0.0
  %1802 = vmatprep.subr.mxu0 0.0
  %1803 = vmatpush2.msra.mxu0 0.0
  %1804 = vmatprep.subr.mxu0 0.0
  %1805 = vmatpush2.msra.mxu0 0.0
  %1806 = vmatprep.subr.mxu0 0.0
  %1807 = vmatpush2.msra.mxu0 0.0
  %1808 = vmatprep.subr.mxu0 0.0
  %1809 = vmatpush2.msra.mxu0 0.0
  %1810 = vmatprep.subr.mxu0 0.0
  %1811 = vmatpush2.msra.mxu0 0.0
  %1812 = vmatprep.subr.mxu0 0.0
  %1813 = vmatpush2.msra.mxu0 0.0
  %1814 = vmatprep.subr.mxu0 0.0
  %1815 = vmatpush2.msra.mxu0 0.0
  %1816 = vmatprep.subr.mxu0 0.0
  %1817 = vmatpush2.msra.mxu0 0.0
  %1818 = vmatprep.subr.mxu0 0.0
  %1819 = vmatpush2.msra.mxu0 0.0
  %1820 = vmatprep.subr.mxu0 0.0
  %1821 = vmatpush2.msra.mxu0 0.0
  %1822 = vmatprep.subr.mxu0 0.0
  %1823 = vmatpush2.msra.mxu0 0.0
  %1824 = vmatprep.subr.mxu0 0.0
  %1825 = vmatpush2.msra.mxu0 0.0
  %1826 = vmatprep.subr.mxu0 0.0
  %1827 = vmatpush2.msra.mxu0 0.0
  %1828 = vmatprep.mubr.f32.mxu0 0.0
  %1829 = vmatmul.mubr.f32.gmra.mxu0 %v1763
  %v1830 = vpop.f32.mrf.mxu0
  %v1831 = vadd.f32 0.0, %v1830
  %v1832 = vpop.f32.mrf.mxu0
  %v1833 = vadd.f32 0.0, %v1832
  %1834 = vdwg.mxu0
  %1835 = vmatprep.subr.mxu0 %v147
  %1836 = vmatpush1.msra.mxu0 %v146
  %1837 = vmatprep.subr.mxu0 %v143
  %1838 = vmatpush1.msra.mxu0 %v142
  %1839 = vmatprep.subr.mxu0 %v139
  %1840 = vmatpush1.msra.mxu0 %v138
  %1841 = vmatprep.subr.mxu0 %v135
  %1842 = vmatpush1.msra.mxu0 %v134
  %1843 = vmatprep.subr.mxu0 %v131
  %1844 = vmatpush1.msra.mxu0 %v130
  %1845 = vmatprep.subr.mxu0 %v127
  %1846 = vmatpush1.msra.mxu0 %v126
  %1847 = vmatprep.subr.mxu0 %v123
  %1848 = vmatpush1.msra.mxu0 %v122
  %1849 = vmatprep.subr.mxu0 %v119
  %1850 = vmatpush1.msra.mxu0 %v118
  %1851 = vmatprep.subr.mxu0 %v115
  %1852 = vmatpush1.msra.mxu0 %v114
  %1853 = vmatprep.subr.mxu0 %v111
  %1854 = vmatpush1.msra.mxu0 %v110
  %1855 = vmatprep.subr.mxu0 %v107
  %1856 = vmatpush1.msra.mxu0 %v106
  %1857 = vmatprep.subr.mxu0 %v103
  %1858 = vmatpush1.msra.mxu0 %v102
  %1859 = vmatprep.subr.mxu0 %v99
  %1860 = vmatpush1.msra.mxu0 %v98
  %1861 = vmatprep.subr.mxu0 %v95
  %1862 = vmatpush1.msra.mxu0 %v94
  %1863 = vmatprep.subr.mxu0 %v91
  %1864 = vmatpush1.msra.mxu0 %v90
  %1865 = vmatprep.subr.mxu0 %v87
  %1866 = vmatpush1.msra.mxu0 %v86
  %1867 = vmatprep.subr.mxu0 0.0
  %1868 = vmatpush2.msra.mxu0 0.0
  %1869 = vmatprep.subr.mxu0 0.0
  %1870 = vmatpush2.msra.mxu0 0.0
  %1871 = vmatprep.subr.mxu0 0.0
  %1872 = vmatpush2.msra.mxu0 0.0
  %1873 = vmatprep.subr.mxu0 0.0
  %1874 = vmatpush2.msra.mxu0 0.0
  %1875 = vmatprep.subr.mxu0 0.0
  %1876 = vmatpush2.msra.mxu0 0.0
  %1877 = vmatprep.subr.mxu0 0.0
  %1878 = vmatpush2.msra.mxu0 0.0
  %1879 = vmatprep.subr.mxu0 0.0
  %1880 = vmatpush2.msra.mxu0 0.0
  %1881 = vmatprep.subr.mxu0 0.0
  %1882 = vmatpush2.msra.mxu0 0.0
  %1883 = vmatprep.subr.mxu0 0.0
  %1884 = vmatpush2.msra.mxu0 0.0
  %1885 = vmatprep.subr.mxu0 0.0
  %1886 = vmatpush2.msra.mxu0 0.0
  %1887 = vmatprep.subr.mxu0 0.0
  %1888 = vmatpush2.msra.mxu0 0.0
  %1889 = vmatprep.subr.mxu0 0.0
  %1890 = vmatpush2.msra.mxu0 0.0
  %1891 = vmatprep.subr.mxu0 0.0
  %1892 = vmatpush2.msra.mxu0 0.0
  %1893 = vmatprep.subr.mxu0 0.0
  %1894 = vmatpush2.msra.mxu0 0.0
  %1895 = vmatprep.subr.mxu0 0.0
  %1896 = vmatpush2.msra.mxu0 0.0
  %1897 = vmatprep.subr.mxu0 0.0
  %1898 = vmatpush2.msra.mxu0 0.0
  %1899 = vmatprep.mubr.f32.mxu0 0.0
  %1900 = vmatmul.mubr.f32.gmra.mxu0 %v1763
  %v1901 = vpop.f32.mrf.mxu0
  %v1902 = vadd.f32 0.0, %v1901
  %v1903 = vpop.f32.mrf.mxu0
  %v1904 = vadd.f32 0.0, %v1903
  %1905 = vdwg.mxu0
  %1907 = vset.pattern.permute.xlu0 72
  %1908 = vperm.xlu0 %1907, %v1762
  %v1909 = vpop.permute.xlu0 %1908
  %v1911 = vsel %vm710, %v1762, 0
  %v1914 = vsel %vm713, %v1831, 0
  %v1917 = vsel %vm713, %v1833, 0
  %v1920 = vsel %vm713, %v1902, 0
  %v1923 = vsel %vm713, %v1904, 0
  %1925 = vmatprep.subr.mxu0 0.0
  %1926 = vmatpush1.msra.mxu0 0.0
  %1927 = vmatprep.subr.mxu0 0.0
  %1928 = vmatpush1.msra.mxu0 0.0
  %1929 = vmatprep.subr.mxu0 0.0
  %1930 = vmatpush1.msra.mxu0 0.0
  %1931 = vmatprep.subr.mxu0 0.0
  %1932 = vmatpush1.msra.mxu0 0.0
  %1933 = vmatprep.subr.mxu0 0.0
  %1934 = vmatpush1.msra.mxu0 0.0
  %1935 = vmatprep.subr.mxu0 0.0
  %1936 = vmatpush1.msra.mxu0 0.0
  %1937 = vmatprep.subr.mxu0 0.0
  %1938 = vmatpush1.msra.mxu0 0.0
  %1939 = vmatprep.subr.mxu0 0.0
  %1940 = vmatpush1.msra.mxu0 0.0
  %1941 = vmatprep.subr.mxu0 0.0
  %1942 = vmatpush1.msra.mxu0 0.0
  %1943 = vmatprep.subr.mxu0 0.0
  %1944 = vmatpush1.msra.mxu0 0.0
  %1945 = vmatprep.subr.mxu0 0.0
  %1946 = vmatpush1.msra.mxu0 0.0
  %1947 = vmatprep.subr.mxu0 0.0
  %1948 = vmatpush1.msra.mxu0 0.0
  %1949 = vmatprep.subr.mxu0 0.0
  %1950 = vmatpush1.msra.mxu0 0.0
  %1951 = vmatprep.subr.mxu0 0.0
  %1952 = vmatpush1.msra.mxu0 0.0
  %1953 = vmatprep.subr.mxu0 0.0
  %1954 = vmatpush1.msra.mxu0 0.0
  %1955 = vmatprep.subr.mxu0 %v1917
  %1956 = vmatpush1.msra.mxu0 %v1914
  %1957 = vmatprep.subr.mxu0 0.0
  %1958 = vmatpush2.msra.mxu0 0.0
  %1959 = vmatprep.subr.mxu0 0.0
  %1960 = vmatpush2.msra.mxu0 0.0
  %1961 = vmatprep.subr.mxu0 0.0
  %1962 = vmatpush2.msra.mxu0 0.0
  %1963 = vmatprep.subr.mxu0 0.0
  %1964 = vmatpush2.msra.mxu0 0.0
  %1965 = vmatprep.subr.mxu0 0.0
  %1966 = vmatpush2.msra.mxu0 0.0
  %1967 = vmatprep.subr.mxu0 0.0
  %1968 = vmatpush2.msra.mxu0 0.0
  %1969 = vmatprep.subr.mxu0 0.0
  %1970 = vmatpush2.msra.mxu0 0.0
  %1971 = vmatprep.subr.mxu0 0.0
  %1972 = vmatpush2.msra.mxu0 0.0
  %1973 = vmatprep.subr.mxu0 0.0
  %1974 = vmatpush2.msra.mxu0 0.0
  %1975 = vmatprep.subr.mxu0 0.0
  %1976 = vmatpush2.msra.mxu0 0.0
  %1977 = vmatprep.subr.mxu0 0.0
  %1978 = vmatpush2.msra.mxu0 0.0
  %1979 = vmatprep.subr.mxu0 0.0
  %1980 = vmatpush2.msra.mxu0 0.0
  %1981 = vmatprep.subr.mxu0 0.0
  %1982 = vmatpush2.msra.mxu0 0.0
  %1983 = vmatprep.subr.mxu0 0.0
  %1984 = vmatpush2.msra.mxu0 0.0
  %1985 = vmatprep.subr.mxu0 0.0
  %1986 = vmatpush2.msra.mxu0 0.0
  %1987 = vmatprep.subr.mxu0 0.0
  %1988 = vmatpush2.msra.mxu0 0.0
  %1989 = vmatprep.mubr.f32.mxu0 0.0
  %1990 = vmatmul.mubr.f32.gmra.mxu0 %v1911
  %v1991 = vpop.f32.mrf.mxu0
  %v1992 = vadd.f32 %v1909, %v1991
  %v1993 = vpop.f32.mrf.mxu0
  %v1994 = vadd.f32 %v1909, %v1993
  %1995 = vdwg.mxu0
  %1996 = vmatprep.subr.mxu0 0.0
  %1997 = vmatpush1.msra.mxu0 0.0
  %1998 = vmatprep.subr.mxu0 0.0
  %1999 = vmatpush1.msra.mxu0 0.0
  %2000 = vmatprep.subr.mxu0 0.0
  %2001 = vmatpush1.msra.mxu0 0.0
  %2002 = vmatprep.subr.mxu0 0.0
  %2003 = vmatpush1.msra.mxu0 0.0
  %2004 = vmatprep.subr.mxu0 0.0
  %2005 = vmatpush1.msra.mxu0 0.0
  %2006 = vmatprep.subr.mxu0 0.0
  %2007 = vmatpush1.msra.mxu0 0.0
  %2008 = vmatprep.subr.mxu0 0.0
  %2009 = vmatpush1.msra.mxu0 0.0
  %2010 = vmatprep.subr.mxu0 0.0
  %2011 = vmatpush1.msra.mxu0 0.0
  %2012 = vmatprep.subr.mxu0 0.0
  %2013 = vmatpush1.msra.mxu0 0.0
  %2014 = vmatprep.subr.mxu0 0.0
  %2015 = vmatpush1.msra.mxu0 0.0
  %2016 = vmatprep.subr.mxu0 0.0
  %2017 = vmatpush1.msra.mxu0 0.0
  %2018 = vmatprep.subr.mxu0 0.0
  %2019 = vmatpush1.msra.mxu0 0.0
  %2020 = vmatprep.subr.mxu0 0.0
  %2021 = vmatpush1.msra.mxu0 0.0
  %2022 = vmatprep.subr.mxu0 0.0
  %2023 = vmatpush1.msra.mxu0 0.0
  %2024 = vmatprep.subr.mxu0 0.0
  %2025 = vmatpush1.msra.mxu0 0.0
  %2026 = vmatprep.subr.mxu0 %v1923
  %2027 = vmatpush1.msra.mxu0 %v1920
  %2028 = vmatprep.subr.mxu0 0.0
  %2029 = vmatpush2.msra.mxu0 0.0
  %2030 = vmatprep.subr.mxu0 0.0
  %2031 = vmatpush2.msra.mxu0 0.0
  %2032 = vmatprep.subr.mxu0 0.0
  %2033 = vmatpush2.msra.mxu0 0.0
  %2034 = vmatprep.subr.mxu0 0.0
  %2035 = vmatpush2.msra.mxu0 0.0
  %2036 = vmatprep.subr.mxu0 0.0
  %2037 = vmatpush2.msra.mxu0 0.0
  %2038 = vmatprep.subr.mxu0 0.0
  %2039 = vmatpush2.msra.mxu0 0.0
  %2040 = vmatprep.subr.mxu0 0.0
  %2041 = vmatpush2.msra.mxu0 0.0
  %2042 = vmatprep.subr.mxu0 0.0
  %2043 = vmatpush2.msra.mxu0 0.0
  %2044 = vmatprep.subr.mxu0 0.0
  %2045 = vmatpush2.msra.mxu0 0.0
  %2046 = vmatprep.subr.mxu0 0.0
  %2047 = vmatpush2.msra.mxu0 0.0
  %2048 = vmatprep.subr.mxu0 0.0
  %2049 = vmatpush2.msra.mxu0 0.0
  %2050 = vmatprep.subr.mxu0 0.0
  %2051 = vmatpush2.msra.mxu0 0.0
  %2052 = vmatprep.subr.mxu0 0.0
  %2053 = vmatpush2.msra.mxu0 0.0
  %2054 = vmatprep.subr.mxu0 0.0
  %2055 = vmatpush2.msra.mxu0 0.0
  %2056 = vmatprep.subr.mxu0 0.0
  %2057 = vmatpush2.msra.mxu0 0.0
  %2058 = vmatprep.subr.mxu0 0.0
  %2059 = vmatpush2.msra.mxu0 0.0
  %2060 = vmatprep.mubr.f32.mxu0 0.0
  %2061 = vmatmul.mubr.f32.gmra.mxu0 %v1911
  %v2062 = vpop.f32.mrf.mxu0
  %v2063 = vadd.f32 %v1909, %v2062
  %v2064 = vpop.f32.mrf.mxu0
  %v2065 = vadd.f32 %v1909, %v2064
  %2066 = vdwg.mxu0
  %v2067 = vmul.f32 %v1992, 0.01
  %v2068 = vmul.f32 %v1994, 0.01
  %v2069 = vmul.f32 %v2063, 0.01
  %v2070 = vmul.f32 %v2065, 0.01
  %v2071 = vmax.f32 %v1992, %v2067
  %v2072 = vmax.f32 %v1994, %v2068
  %v2073 = vmax.f32 %v2063, %v2069
  %v2074 = vmax.f32 %v2065, %v2070
  %v2075 = vld [vmem:[%s4 + $0x48] sm:$0xff]
  %v2076 = vadd.f32 %v1758, %v2071
  %v2077 = vadd.f32 %v1759, %v2072
  %v2078 = vadd.f32 %v1760, %v2073
  %v2079 = vadd.f32 %v1761, %v2074
  %2080 = vrot.lane.b32.xlu0 %v2076, 17
  %v2081 = vpop.permute.xlu0 %2080
  %2082 = vrot.lane.b32.xlu0 %v2077, 17
  %v2083 = vpop.permute.xlu0 %2082
  %2084 = vrot.lane.b32.xlu0 %v2078, 17
  %v2085 = vpop.permute.xlu0 %2084
  %2086 = vrot.lane.b32.xlu0 %v2079, 17
  %v2087 = vpop.permute.xlu0 %2086
  %v2088 = vsel %vm1348, %v2085, %v2087
  %v2089 = vsel %vm1348, %v2083, %v2085
  %v2090 = vsel %vm1348, %v2081, %v2083
  %v2091 = vsel %vm1348, %v2087, %v2081
  %v2092 = vmul.f32 %v2091, %v1356
  %v2093 = vmul.f32 %v2090, %v1360
  %v2094 = vmul.f32 %v2089, %v1364
  %v2095 = vmul.f32 %v2088, %v1368
  %2096 = vrot.lane.b32.xlu0 %v2076, 16
  %v2097 = vpop.permute.xlu0 %2096
  %2098 = vrot.lane.b32.xlu0 %v2077, 16
  %v2099 = vpop.permute.xlu0 %2098
  %2100 = vrot.lane.b32.xlu0 %v2078, 16
  %v2101 = vpop.permute.xlu0 %2100
  %2102 = vrot.lane.b32.xlu0 %v2079, 16
  %v2103 = vpop.permute.xlu0 %2102
  %v2104 = vsel %vm1381, %v2101, %v2103
  %v2105 = vsel %vm1381, %v2099, %v2101
  %v2106 = vsel %vm1381, %v2097, %v2099
  %v2107 = vsel %vm1381, %v2103, %v2097
  %v2108 = vmul.f32 %v2107, %v1389
  %v2109 = vmul.f32 %v2106, %v1393
  %v2110 = vmul.f32 %v2105, %v1397
  %v2111 = vmul.f32 %v2104, %v1401
  %2112 = vrot.lane.b32.xlu0 %v2076, 15
  %v2113 = vpop.permute.xlu0 %2112
  %2114 = vrot.lane.b32.xlu0 %v2077, 15
  %v2115 = vpop.permute.xlu0 %2114
  %2116 = vrot.lane.b32.xlu0 %v2078, 15
  %v2117 = vpop.permute.xlu0 %2116
  %2118 = vrot.lane.b32.xlu0 %v2079, 15
  %v2119 = vpop.permute.xlu0 %2118
  %v2120 = vsel %vm1414, %v2117, %v2119
  %v2121 = vsel %vm1414, %v2115, %v2117
  %v2122 = vsel %vm1414, %v2113, %v2115
  %v2123 = vsel %vm1414, %v2119, %v2113
  %v2124 = vmul.f32 %v2123, %v1422
  %v2125 = vmul.f32 %v2122, %v1426
  %v2126 = vmul.f32 %v2121, %v1430
  %v2127 = vmul.f32 %v2120, %v1434
  %2128 = vrot.lane.b32.xlu0 %v2076, 1
  %v2129 = vpop.permute.xlu0 %2128
  %2130 = vrot.lane.b32.xlu0 %v2077, 1
  %v2131 = vpop.permute.xlu0 %2130
  %2132 = vrot.lane.b32.xlu0 %v2078, 1
  %v2133 = vpop.permute.xlu0 %2132
  %2134 = vrot.lane.b32.xlu0 %v2079, 1
  %v2135 = vpop.permute.xlu0 %2134
  %v2136 = vsel %vm1447, %v2133, %v2135
  %v2137 = vsel %vm1447, %v2131, %v2133
  %v2138 = vsel %vm1447, %v2129, %v2131
  %v2139 = vsel %vm1447, %v2135, %v2129
  %v2140 = vmul.f32 %v2139, %v1455
  %v2141 = vmul.f32 %v2138, %v1459
  %v2142 = vmul.f32 %v2137, %v1463
  %v2143 = vmul.f32 %v2136, %v1467
  %2144 = vrot.lane.b32.xlu0 %v2076, 127
  %v2145 = vpop.permute.xlu0 %2144
  %2146 = vrot.lane.b32.xlu0 %v2077, 127
  %v2147 = vpop.permute.xlu0 %2146
  %2148 = vrot.lane.b32.xlu0 %v2078, 127
  %v2149 = vpop.permute.xlu0 %2148
  %2150 = vrot.lane.b32.xlu0 %v2079, 127
  %v2151 = vpop.permute.xlu0 %2150
  %v2152 = vsel %vm1480, %v2149, %v2151
  %v2153 = vsel %vm1480, %v2147, %v2149
  %v2154 = vsel %vm1480, %v2145, %v2147
  %v2155 = vsel %vm1480, %v2151, %v2145
  %v2156 = vmul.f32 %v2154, %v1488
  %v2157 = vmul.f32 %v2153, %v1492
  %v2158 = vmul.f32 %v2152, %v1496
  %v2159 = vmul.f32 %v2155, %v1500
  %2160 = vrot.lane.b32.xlu0 %v2076, 113
  %v2161 = vpop.permute.xlu0 %2160
  %2162 = vrot.lane.b32.xlu0 %v2077, 113
  %v2163 = vpop.permute.xlu0 %2162
  %2164 = vrot.lane.b32.xlu0 %v2078, 113
  %v2165 = vpop.permute.xlu0 %2164
  %2166 = vrot.lane.b32.xlu0 %v2079, 113
  %v2167 = vpop.permute.xlu0 %2166
  %v2168 = vsel %vm1513, %v2165, %v2167
  %v2169 = vsel %vm1513, %v2163, %v2165
  %v2170 = vsel %vm1513, %v2161, %v2163
  %v2171 = vsel %vm1513, %v2167, %v2161
  %v2172 = vmul.f32 %v2170, %v1521
  %v2173 = vmul.f32 %v2169, %v1525
  %v2174 = vmul.f32 %v2168, %v1529
  %v2175 = vmul.f32 %v2171, %v1533
  %2176 = vrot.lane.b32.xlu0 %v2076, 112
  %v2177 = vpop.permute.xlu0 %2176
  %2178 = vrot.lane.b32.xlu0 %v2077, 112
  %v2179 = vpop.permute.xlu0 %2178
  %2180 = vrot.lane.b32.xlu0 %v2078, 112
  %v2181 = vpop.permute.xlu0 %2180
  %2182 = vrot.lane.b32.xlu0 %v2079, 112
  %v2183 = vpop.permute.xlu0 %2182
  %v2184 = vsel %vm1546, %v2181, %v2183
  %v2185 = vsel %vm1546, %v2179, %v2181
  %v2186 = vsel %vm1546, %v2177, %v2179
  %v2187 = vsel %vm1546, %v2183, %v2177
  %v2188 = vmul.f32 %v2186, %v1554
  %v2189 = vmul.f32 %v2185, %v1558
  %v2190 = vmul.f32 %v2184, %v1562
  %v2191 = vmul.f32 %v2187, %v1566
  %2192 = vrot.lane.b32.xlu0 %v2076, 111
  %v2193 = vpop.permute.xlu0 %2192
  %2194 = vrot.lane.b32.xlu0 %v2077, 111
  %v2195 = vpop.permute.xlu0 %2194
  %2196 = vrot.lane.b32.xlu0 %v2078, 111
  %v2197 = vpop.permute.xlu0 %2196
  %2198 = vrot.lane.b32.xlu0 %v2079, 111
  %v2199 = vpop.permute.xlu0 %2198
  %v2200 = vsel %vm1579, %v2197, %v2199
  %v2201 = vsel %vm1579, %v2195, %v2197
  %v2202 = vsel %vm1579, %v2193, %v2195
  %v2203 = vsel %vm1579, %v2199, %v2193
  %v2204 = vmul.f32 %v2202, %v1587
  %v2205 = vmul.f32 %v2201, %v1591
  %v2206 = vmul.f32 %v2200, %v1595
  %v2207 = vmul.f32 %v2203, %v1599
  %2209 = vset.pattern.permute.xlu0 72
  %2210 = vperm.xlu0 %2209, %v2075
  %v2211 = vpop.permute.xlu0 %2210
  %v2213 = vsel %vm1609, %v2075, 0
  %2215 = vmatprep.subr.mxu0 0.0
  %2216 = vmatpush1.msra.mxu0 0.0
  %2217 = vmatprep.subr.mxu0 0.0
  %2218 = vmatpush1.msra.mxu0 0.0
  %2219 = vmatprep.subr.mxu0 0.0
  %2220 = vmatpush1.msra.mxu0 0.0
  %2221 = vmatprep.subr.mxu0 0.0
  %2222 = vmatpush1.msra.mxu0 0.0
  %2223 = vmatprep.subr.mxu0 0.0
  %2224 = vmatpush1.msra.mxu0 0.0
  %2225 = vmatprep.subr.mxu0 0.0
  %2226 = vmatpush1.msra.mxu0 0.0
  %2227 = vmatprep.subr.mxu0 0.0
  %2228 = vmatpush1.msra.mxu0 0.0
  %2229 = vmatprep.subr.mxu0 %v2205
  %2230 = vmatpush1.msra.mxu0 %v2204
  %2231 = vmatprep.subr.mxu0 %v2189
  %2232 = vmatpush1.msra.mxu0 %v2188
  %2233 = vmatprep.subr.mxu0 %v2173
  %2234 = vmatpush1.msra.mxu0 %v2172
  %2235 = vmatprep.subr.mxu0 %v2157
  %2236 = vmatpush1.msra.mxu0 %v2156
  %2237 = vmatprep.subr.mxu0 %v2077
  %2238 = vmatpush1.msra.mxu0 %v2076
  %2239 = vmatprep.subr.mxu0 %v2141
  %2240 = vmatpush1.msra.mxu0 %v2140
  %2241 = vmatprep.subr.mxu0 %v2125
  %2242 = vmatpush1.msra.mxu0 %v2124
  %2243 = vmatprep.subr.mxu0 %v2109
  %2244 = vmatpush1.msra.mxu0 %v2108
  %2245 = vmatprep.subr.mxu0 %v2093
  %2246 = vmatpush1.msra.mxu0 %v2092
  %2247 = vmatprep.subr.mxu0 0.0
  %2248 = vmatpush2.msra.mxu0 0.0
  %2249 = vmatprep.subr.mxu0 0.0
  %2250 = vmatpush2.msra.mxu0 0.0
  %2251 = vmatprep.subr.mxu0 0.0
  %2252 = vmatpush2.msra.mxu0 0.0
  %2253 = vmatprep.subr.mxu0 0.0
  %2254 = vmatpush2.msra.mxu0 0.0
  %2255 = vmatprep.subr.mxu0 0.0
  %2256 = vmatpush2.msra.mxu0 0.0
  %2257 = vmatprep.subr.mxu0 0.0
  %2258 = vmatpush2.msra.mxu0 0.0
  %2259 = vmatprep.subr.mxu0 0.0
  %2260 = vmatpush2.msra.mxu0 0.0
  %2261 = vmatprep.subr.mxu0 0.0
  %2262 = vmatpush2.msra.mxu0 0.0
  %2263 = vmatprep.subr.mxu0 0.0
  %2264 = vmatpush2.msra.mxu0 0.0
  %2265 = vmatprep.subr.mxu0 0.0
  %2266 = vmatpush2.msra.mxu0 0.0
  %2267 = vmatprep.subr.mxu0 0.0
  %2268 = vmatpush2.msra.mxu0 0.0
  %2269 = vmatprep.subr.mxu0 0.0
  %2270 = vmatpush2.msra.mxu0 0.0
  %2271 = vmatprep.subr.mxu0 0.0
  %2272 = vmatpush2.msra.mxu0 0.0
  %2273 = vmatprep.subr.mxu0 0.0
  %2274 = vmatpush2.msra.mxu0 0.0
  %2275 = vmatprep.subr.mxu0 0.0
  %2276 = vmatpush2.msra.mxu0 0.0
  %2277 = vmatprep.subr.mxu0 0.0
  %2278 = vmatpush2.msra.mxu0 0.0
  %2279 = vmatprep.mubr.f32.mxu0 0.0
  %2280 = vmatmul.mubr.f32.gmra.mxu0 %v2213
  %v2281 = vpop.f32.mrf.mxu0
  %v2282 = vadd.f32 %v2211, %v2281
  %v2283 = vpop.f32.mrf.mxu0
  %v2284 = vadd.f32 %v2211, %v2283
  %2285 = vdwg.mxu0
  %2286 = vmatprep.subr.mxu0 0.0
  %2287 = vmatpush1.msra.mxu0 0.0
  %2288 = vmatprep.subr.mxu0 0.0
  %2289 = vmatpush1.msra.mxu0 0.0
  %2290 = vmatprep.subr.mxu0 0.0
  %2291 = vmatpush1.msra.mxu0 0.0
  %2292 = vmatprep.subr.mxu0 0.0
  %2293 = vmatpush1.msra.mxu0 0.0
  %2294 = vmatprep.subr.mxu0 0.0
  %2295 = vmatpush1.msra.mxu0 0.0
  %2296 = vmatprep.subr.mxu0 0.0
  %2297 = vmatpush1.msra.mxu0 0.0
  %2298 = vmatprep.subr.mxu0 0.0
  %2299 = vmatpush1.msra.mxu0 0.0
  %2300 = vmatprep.subr.mxu0 %v2207
  %2301 = vmatpush1.msra.mxu0 %v2206
  %2302 = vmatprep.subr.mxu0 %v2191
  %2303 = vmatpush1.msra.mxu0 %v2190
  %2304 = vmatprep.subr.mxu0 %v2175
  %2305 = vmatpush1.msra.mxu0 %v2174
  %2306 = vmatprep.subr.mxu0 %v2159
  %2307 = vmatpush1.msra.mxu0 %v2158
  %2308 = vmatprep.subr.mxu0 %v2079
  %2309 = vmatpush1.msra.mxu0 %v2078
  %2310 = vmatprep.subr.mxu0 %v2143
  %2311 = vmatpush1.msra.mxu0 %v2142
  %2312 = vmatprep.subr.mxu0 %v2127
  %2313 = vmatpush1.msra.mxu0 %v2126
  %2314 = vmatprep.subr.mxu0 %v2111
  %2315 = vmatpush1.msra.mxu0 %v2110
  %2316 = vmatprep.subr.mxu0 %v2095
  %2317 = vmatpush1.msra.mxu0 %v2094
  %2318 = vmatprep.subr.mxu0 0.0
  %2319 = vmatpush2.msra.mxu0 0.0
  %2320 = vmatprep.subr.mxu0 0.0
  %2321 = vmatpush2.msra.mxu0 0.0
  %2322 = vmatprep.subr.mxu0 0.0
  %2323 = vmatpush2.msra.mxu0 0.0
  %2324 = vmatprep.subr.mxu0 0.0
  %2325 = vmatpush2.msra.mxu0 0.0
  %2326 = vmatprep.subr.mxu0 0.0
  %2327 = vmatpush2.msra.mxu0 0.0
  %2328 = vmatprep.subr.mxu0 0.0
  %2329 = vmatpush2.msra.mxu0 0.0
  %2330 = vmatprep.subr.mxu0 0.0
  %2331 = vmatpush2.msra.mxu0 0.0
  %2332 = vmatprep.subr.mxu0 0.0
  %2333 = vmatpush2.msra.mxu0 0.0
  %2334 = vmatprep.subr.mxu0 0.0
  %2335 = vmatpush2.msra.mxu0 0.0
  %2336 = vmatprep.subr.mxu0 0.0
  %2337 = vmatpush2.msra.mxu0 0.0
  %2338 = vmatprep.subr.mxu0 0.0
  %2339 = vmatpush2.msra.mxu0 0.0
  %2340 = vmatprep.subr.mxu0 0.0
  %2341 = vmatpush2.msra.mxu0 0.0
  %2342 = vmatprep.subr.mxu0 0.0
  %2343 = vmatpush2.msra.mxu0 0.0
  %2344 = vmatprep.subr.mxu0 0.0
  %2345 = vmatpush2.msra.mxu0 0.0
  %2346 = vmatprep.subr.mxu0 0.0
  %2347 = vmatpush2.msra.mxu0 0.0
  %2348 = vmatprep.subr.mxu0 0.0
  %2349 = vmatpush2.msra.mxu0 0.0
  %2350 = vmatprep.mubr.f32.mxu0 0.0
  %2351 = vmatmul.mubr.f32.gmra.mxu0 %v2213
  %v2352 = vpop.f32.mrf.mxu0
  %v2353 = vadd.f32 %v2211, %v2352
  %v2354 = vpop.f32.mrf.mxu0
  %v2355 = vadd.f32 %v2211, %v2354
  %2356 = vdwg.mxu0
  %v2357 = vmul.f32 %v2282, 0.01
  %v2358 = vmul.f32 %v2284, 0.01
  %v2359 = vmul.f32 %v2353, 0.01
  %v2360 = vmul.f32 %v2355, 0.01
  %v2361 = vmax.f32 %v2282, %v2357
  %v2362 = vmax.f32 %v2284, %v2358
  %v2363 = vmax.f32 %v2353, %v2359
  %v2364 = vmax.f32 %v2355, %v2360
  %2365 = vst [vmem:[%s5] sm:$0xff] %v2361
  %2366 = vst [vmem:[%s5 + $0x8] sm:$0xff] %v2362
  %2367 = vst [vmem:[%s5 + $0x10] sm:$0xff] %v2363
  %2368 = vst [vmem:[%s5 + $0x18] sm:$0xff] %v2364
  // Predicated region
  $region22: #{fcdh_forward.1} parent=0 // pred_check
    _
  $region23: #{fcdh_forward.1} parent=0 // pred_check_branch
    %2370 = sbr.rel (0) target = $region25
  $region24: #{fcdh_forward.1} parent=0 // pred_region
    _
  $region25: #{fcdh_forward.1} parent=0 // pred_fallthru
    _
  // Predicated region
  $region26: #{fcdh_forward.1} parent=0 // pred_check
    _
  $region27: #{fcdh_forward.1} parent=0 // pred_check_branch
    %2372 = sbr.rel (0) target = $region29
  $region28: #{fcdh_forward.1} parent=0 // pred_region
    _
  $region29: #{fcdh_forward.1} parent=0 // pred_fallthru
    _

</llo_original>
